<compile_context>
chip_gen: v7x
topology: tpu7x:2x2x1
jax: 0.10.0
libtpu: 0.0.40
codegen_flags: <defaults>
</compile_context>

<pallas_src>
import jax
import jax.numpy as jnp
from jax import lax
from jax.experimental import pallas as pl
from jax.experimental.pallas import tpu as pltpu

STYLE_DIM = 256          # style_dim of TeethGenerator(256, 256, ...)
N_MLP = 8                # n_mlp=8
N_RANDN = 10000          # torch.randn((10000, 256))
NUM_LABELS = 2           # num_labels=2 -> geometry channels
C_MID = 32               # synthesis feature channels (synthetic)
C_RGB = 3
MAX_PIX_TILE = 65536     # pixels per grid step (lane-dense, multiple of 128)


def _leaky(x, slope=0.2):
    # Exact leaky-relu for slope < 1: mul+max (2 VPU ops) vs cmp+select+mul.
    return jnp.maximum(x, slope * x)


def _round_up(x, m):
    return ((x + m - 1) // m) * m


# ----------------------------------------------------------------------------
# Kernel 1: latent path (single grid step).
#   codes (1, 256) -> 8-layer mapping MLP -> StyleGAN2 modulate/demodulate
#   -> effective 1x1-conv weight (C_MID, NUM_LABELS).
# ----------------------------------------------------------------------------
def latent_kernel(codes_ref, mlpw_ref, mlpb_ref, affine_ref, conv1t_ref,
                  weff_ref):
    x = codes_ref[...]                                           # (1, 256)
    for l in range(N_MLP):                                       # unrolled MLP
        x = _leaky(
            jnp.dot(x, mlpw_ref[l], preferred_element_type=jnp.float32)
            + mlpb_ref[pl.ds(l, 1), :])
    # StyleGAN2 modulation + demodulation in (c_out, c_in) orientation.
    style = jnp.dot(x, affine_ref[...],
                    preferred_element_type=jnp.float32) + 1.0    # (1, 2)
    w_mod = conv1t_ref[...] * style                              # (32, 2)
    demod = lax.rsqrt(jnp.sum(w_mod * w_mod, axis=1, keepdims=True) + 1e-8)
    weff_ref[...] = w_mod * demod                                # (32, 2)


def run_latent(codes, mlp_w, mlp_b, affine_w, conv1_t):
    # Single step: every index_map is constant, so a serial grid would only
    # add per-step overhead; all operands (mlp_w = 2 MiB) fit in VMEM.
    return pl.pallas_call(
        latent_kernel,
        out_shape=jax.ShapeDtypeStruct((C_MID, NUM_LABELS), jnp.float32),
        grid=(1,),
        in_specs=[
            pl.BlockSpec((1, STYLE_DIM), lambda i: (0, 0)),
            pl.BlockSpec((N_MLP, STYLE_DIM, STYLE_DIM), lambda i: (0, 0, 0)),
            pl.BlockSpec((N_MLP, STYLE_DIM), lambda i: (0, 0)),
            pl.BlockSpec((STYLE_DIM, NUM_LABELS), lambda i: (0, 0)),
            pl.BlockSpec((C_MID, NUM_LABELS), lambda i: (0, 0)),
        ],
        out_specs=pl.BlockSpec((C_MID, NUM_LABELS), lambda i: (0, 0)),
        compiler_params=pltpu.CompilerParams(
            dimension_semantics=("arbitrary",)),
    )(codes, mlp_w, mlp_b, affine_w, conv1_t)


# ----------------------------------------------------------------------------
# Kernel 2: synthesis hot path, channels-first / pixels-on-lanes.
#   feat = leaky(W_eff . geo + b1)     (K=2  -> MXU, relieves the VPU slot)
#   rgb  = W_rgb . feat + b_rgb        (K=32 -> MXU)
#   out  = bg + mask * (rgb - bg)      (lerp composite, 1 fewer VPU op/elem)
# All blocks have the pixel dim last (multiple of 128) -> lane-dense vld/vst.
# ----------------------------------------------------------------------------
def synth_kernel(geo_ref, mask_ref, bg_ref, weff_ref, b1_ref, wrgb_ref,
                 brgb_ref, out_ref):
    g = geo_ref[...]                                             # (2, T)
    feat = _leaky(
        jnp.dot(weff_ref[...], g, preferred_element_type=jnp.float32)
        + b1_ref[...])                                           # (32, T)
    rgb = (jnp.dot(wrgb_ref[...], feat, preferred_element_type=jnp.float32)
           + brgb_ref[...])                                      # (3, T)
    m = mask_ref[...]                                            # (1, T)
    bg = bg_ref[...]                                             # (3, T)
    out_ref[...] = bg + m * (rgb - bg)


def run_synth(geo, msk, bg, weff_t, b1, wrgb_t, brgb, pix_tile):
    B, _, hw_pad = geo.shape
    grid = (B, hw_pad // pix_tile)
    return pl.pallas_call(
        synth_kernel,
        out_shape=jax.ShapeDtypeStruct((B, C_RGB, hw_pad), jnp.float32),
        grid=grid,
        in_specs=[
            pl.BlockSpec((None, NUM_LABELS, pix_tile), lambda b, i: (b, 0, i)),
            pl.BlockSpec((None, 1, pix_tile), lambda b, i: (b, 0, i)),
            pl.BlockSpec((None, C_RGB, pix_tile), lambda b, i: (b, 0, i)),
            pl.BlockSpec((C_MID, NUM_LABELS), lambda b, i: (0, 0)),
            pl.BlockSpec((C_MID, 1), lambda b, i: (0, 0)),
            pl.BlockSpec((C_RGB, C_MID), lambda b, i: (0, 0)),
            pl.BlockSpec((C_RGB, 1), lambda b, i: (0, 0)),
        ],
        out_specs=pl.BlockSpec((None, C_RGB, pix_tile),
                               lambda b, i: (b, 0, i)),
        compiler_params=pltpu.CompilerParams(
            dimension_semantics=("parallel", "parallel"),
            vmem_limit_bytes=48 * 1024 * 1024),
    )(geo, msk, bg, weff_t, b1, wrgb_t, brgb)


# ----------------------------------------------------------------------------
# Tiling: prefer a pixel tile that divides H*W exactly (no pad / no slice).
# ----------------------------------------------------------------------------
def _choose_tiling(hw, batch):
    if hw % 128 == 0:
        n128 = hw // 128
        pix_tile = 128
        for d in range(min(n128, MAX_PIX_TILE // 128), 0, -1):
            if n128 % d == 0:
                pix_tile = d * 128
                break
        hw_pad = hw
    elif hw <= MAX_PIX_TILE:
        pix_tile = _round_up(hw, 128)
        hw_pad = pix_tile
    else:
        pix_tile = MAX_PIX_TILE
        hw_pad = _round_up(hw, pix_tile)
    # v7x megacore: with batch == 1 make sure the grid has >= 2 cells so both
    # TensorCores get work (the pixel axis is already "parallel").
    if batch == 1 and hw_pad // pix_tile < 2 and pix_tile % 256 == 0:
        pix_tile //= 2
    return pix_tile, hw_pad


# ----------------------------------------------------------------------------
# Parameter init (deterministic, synthetic — no checkpoint loading).
# Weights stored in the (c_out, c_in) orientation the kernels consume.
# ----------------------------------------------------------------------------
def init_params(key):
    ks = jax.random.split(key, 4)
    s_style = 1.0 / jnp.sqrt(jnp.float32(STYLE_DIM))
    return dict(
        mlp_w=jax.random.normal(ks[0], (N_MLP, STYLE_DIM, STYLE_DIM),
                                jnp.float32) * s_style,
        mlp_b=jnp.zeros((N_MLP, STYLE_DIM), jnp.float32),
        affine_w=jax.random.normal(ks[1], (STYLE_DIM, NUM_LABELS),
                                   jnp.float32) * s_style,
        conv1_t=jax.random.normal(ks[2], (C_MID, NUM_LABELS), jnp.float32)
        * (1.0 / jnp.sqrt(jnp.float32(NUM_LABELS))),
        conv1_b=jnp.zeros((C_MID, 1), jnp.float32),
        rgb_t=jax.random.normal(ks[3], (C_RGB, C_MID), jnp.float32)
        * (1.0 / jnp.sqrt(jnp.float32(C_MID))),
        rgb_b=jnp.zeros((C_RGB, 1), jnp.float32),
    )


# ----------------------------------------------------------------------------
# Full forward (alignModel.forward equivalent)
# ----------------------------------------------------------------------------
def align_model_forward(params, x, geometry, background, mask, key):
    # `x` is accepted but unused, matching the PyTorch forward.
    del x
    B, _, H, W = geometry.shape
    hw = H * W

    # codes = mean over 10000 N(0,1) samples -> (1, 256).  Plain-XLA draw +
    # reduce (portable; the latent path is latency-noise either way).
    z = jax.random.normal(key, (N_RANDN, STYLE_DIM), jnp.float32)
    codes = jnp.mean(z, axis=0).reshape(1, STYLE_DIM)
    # codes is used twice ([codes, codes]) in the reference; both are equal.

    weff_t = run_latent(codes, params["mlp_w"], params["mlp_b"],
                        params["affine_w"], params["conv1_t"])

    # NCHW is channels-first already: collapsing (H, W) is a free reshape.
    geo = geometry.reshape(B, NUM_LABELS, hw)
    msk = mask.reshape(B, 1, hw)
    bg = background.reshape(B, C_RGB, hw)

    pix_tile, hw_pad = _choose_tiling(hw, B)
    pad = hw_pad - hw
    if pad:  # only when hw is not a multiple of 128
        cfg = ((0, 0), (0, 0), (0, pad))
        geo, msk, bg = jnp.pad(geo, cfg), jnp.pad(msk, cfg), jnp.pad(bg, cfg)

    out = run_synth(geo, msk, bg, weff_t, params["conv1_b"],
                    params["rgb_t"], params["rgb_b"], pix_tile)
    if pad:
        out = out[:, :, :hw]
    return out.reshape(B, C_RGB, H, W)   # NCHW


if __name__ == "__main__":
    key = jax.random.PRNGKey(0)
    kx, kg, kb, km, kp, kz = jax.random.split(key, 6)
    B, H, W = 2, 16, 16

    x = jax.random.normal(kx, (B, 3, H, W), jnp.float32)
    geometry = jax.random.normal(kg, (B, NUM_LABELS, H, W), jnp.float32)
    background = jax.random.normal(kb, (B, 3, H, W), jnp.float32)
    mask = (jax.random.uniform(km, (B, 1, H, W)) > 0.5).astype(jnp.float32)

    params = init_params(kp)
    fwd = jax.jit(align_model_forward)
    image = fwd(params, x, geometry, background, mask, kz)
    jax.block_until_ready(image)

    assert image.shape == (B, 3, H, W), image.shape
    assert image.dtype == jnp.float32
    print("KERNEL_OK")
</pallas_src>

<mosaic_0001>
module attributes {stable_mosaic.version = 11 : i64} {
  func.func @latent_kernel(%arg0: i32, %arg1: memref<1x256xf32, #tpu.memory_space<vmem>>, %arg2: memref<8x256x256xf32, #tpu.memory_space<vmem>>, %arg3: memref<8x256xf32, #tpu.memory_space<vmem>>, %arg4: memref<256x2xf32, #tpu.memory_space<vmem>>, %arg5: memref<32x2xf32, #tpu.memory_space<vmem>>, %arg6: memref<32x2xf32, #tpu.memory_space<vmem>>) attributes {dimension_semantics = [#tpu.dimension_semantics<arbitrary>], iteration_bounds = array<i64: 1>, scalar_prefetch = 0 : i64, scratch_operands = 0 : i64, tpu.core_type = #tpu.core_type<tc>, window_params = [{pipeline_mode = #tpu.pipeline_mode<synchronous>, transform_indices = @transform_0, window_bounds = array<i64: 1, 256>}, {pipeline_mode = #tpu.pipeline_mode<synchronous>, transform_indices = @transform_1, window_bounds = array<i64: 8, 256, 256>}, {pipeline_mode = #tpu.pipeline_mode<synchronous>, transform_indices = @transform_2, window_bounds = array<i64: 8, 256>}, {pipeline_mode = #tpu.pipeline_mode<synchronous>, transform_indices = @transform_3, window_bounds = array<i64: 256, 2>}, {pipeline_mode = #tpu.pipeline_mode<synchronous>, transform_indices = @transform_4, window_bounds = array<i64: 32, 2>}, {pipeline_mode = #tpu.pipeline_mode<synchronous>, transform_indices = @transform_5, window_bounds = array<i64: 32, 2>}]} {
    %c0 = arith.constant 0 : index
    %c0_0 = arith.constant 0 : index
    %0 = vector.load %arg1[%c0, %c0_0] : memref<1x256xf32, #tpu.memory_space<vmem>>, vector<1x256xf32>
    %c0_1 = arith.constant 0 : index
    %c0_2 = arith.constant 0 : index
    %c0_3 = arith.constant 0 : index
    %1 = vector.load %arg2[%c0_1, %c0_2, %c0_3] : memref<8x256x256xf32, #tpu.memory_space<vmem>>, vector<1x256x256xf32>
    %2 = vector.shape_cast %1 : vector<1x256x256xf32> to vector<256x256xf32>
    %cst = arith.constant dense<0.000000e+00> : vector<1x256xf32>
    %3 = tpu.matmul %0, %2, %cst {dimension_numbers = #tpu.dot_dimension_numbers<[1], [0], [0], [1], [0, 0, 1, 1], [], []>} : vector<1x256xf32>, vector<256x256xf32>, vector<1x256xf32> -> vector<1x256xf32>
    %c0_4 = arith.constant 0 : index
    %c0_5 = arith.constant 0 : index
    %4 = vector.load %arg3[%c0_4, %c0_5] : memref<8x256xf32, #tpu.memory_space<vmem>>, vector<1x256xf32>
    %5 = arith.addf %3, %4 : vector<1x256xf32>
    %cst_6 = arith.constant 2.000000e-01 : f32
    %6 = vector.broadcast %cst_6 : f32 to vector<1x256xf32>
    %7 = arith.mulf %6, %5 : vector<1x256xf32>
    %8 = arith.maximumf %5, %7 : vector<1x256xf32>
    %c1 = arith.constant 1 : index
    %c0_7 = arith.constant 0 : index
    %c0_8 = arith.constant 0 : index
    %9 = vector.load %arg2[%c1, %c0_7, %c0_8] : memref<8x256x256xf32, #tpu.memory_space<vmem>>, vector<1x256x256xf32>
    %10 = vector.shape_cast %9 : vector<1x256x256xf32> to vector<256x256xf32>
    %cst_9 = arith.constant dense<0.000000e+00> : vector<1x256xf32>
    %11 = tpu.matmul %8, %10, %cst_9 {dimension_numbers = #tpu.dot_dimension_numbers<[1], [0], [0], [1], [0, 0, 1, 1], [], []>} : vector<1x256xf32>, vector<256x256xf32>, vector<1x256xf32> -> vector<1x256xf32>
    %c1_10 = arith.constant 1 : index
    %c0_11 = arith.constant 0 : index
    %12 = vector.load %arg3[%c1_10, %c0_11] : memref<8x256xf32, #tpu.memory_space<vmem>>, vector<1x256xf32>
    %13 = arith.addf %11, %12 : vector<1x256xf32>
    %cst_12 = arith.constant 2.000000e-01 : f32
    %14 = vector.broadcast %cst_12 : f32 to vector<1x256xf32>
    %15 = arith.mulf %14, %13 : vector<1x256xf32>
    %16 = arith.maximumf %13, %15 : vector<1x256xf32>
    %c2 = arith.constant 2 : index
    %c0_13 = arith.constant 0 : index
    %c0_14 = arith.constant 0 : index
    %17 = vector.load %arg2[%c2, %c0_13, %c0_14] : memref<8x256x256xf32, #tpu.memory_space<vmem>>, vector<1x256x256xf32>
    %18 = vector.shape_cast %17 : vector<1x256x256xf32> to vector<256x256xf32>
    %cst_15 = arith.constant dense<0.000000e+00> : vector<1x256xf32>
    %19 = tpu.matmul %16, %18, %cst_15 {dimension_numbers = #tpu.dot_dimension_numbers<[1], [0], [0], [1], [0, 0, 1, 1], [], []>} : vector<1x256xf32>, vector<256x256xf32>, vector<1x256xf32> -> vector<1x256xf32>
    %c2_16 = arith.constant 2 : index
    %c0_17 = arith.constant 0 : index
    %20 = vector.load %arg3[%c2_16, %c0_17] : memref<8x256xf32, #tpu.memory_space<vmem>>, vector<1x256xf32>
    %21 = arith.addf %19, %20 : vector<1x256xf32>
    %cst_18 = arith.constant 2.000000e-01 : f32
    %22 = vector.broadcast %cst_18 : f32 to vector<1x256xf32>
    %23 = arith.mulf %22, %21 : vector<1x256xf32>
    %24 = arith.maximumf %21, %23 : vector<1x256xf32>
    %c3 = arith.constant 3 : index
    %c0_19 = arith.constant 0 : index
    %c0_20 = arith.constant 0 : index
    %25 = vector.load %arg2[%c3, %c0_19, %c0_20] : memref<8x256x256xf32, #tpu.memory_space<vmem>>, vector<1x256x256xf32>
    %26 = vector.shape_cast %25 : vector<1x256x256xf32> to vector<256x256xf32>
    %cst_21 = arith.constant dense<0.000000e+00> : vector<1x256xf32>
    %27 = tpu.matmul %24, %26, %cst_21 {dimension_numbers = #tpu.dot_dimension_numbers<[1], [0], [0], [1], [0, 0, 1, 1], [], []>} : vector<1x256xf32>, vector<256x256xf32>, vector<1x256xf32> -> vector<1x256xf32>
    %c3_22 = arith.constant 3 : index
    %c0_23 = arith.constant 0 : index
    %28 = vector.load %arg3[%c3_22, %c0_23] : memref<8x256xf32, #tpu.memory_space<vmem>>, vector<1x256xf32>
    %29 = arith.addf %27, %28 : vector<1x256xf32>
    %cst_24 = arith.constant 2.000000e-01 : f32
    %30 = vector.broadcast %cst_24 : f32 to vector<1x256xf32>
    %31 = arith.mulf %30, %29 : vector<1x256xf32>
    %32 = arith.maximumf %29, %31 : vector<1x256xf32>
    %c4 = arith.constant 4 : index
    %c0_25 = arith.constant 0 : index
    %c0_26 = arith.constant 0 : index
    %33 = vector.load %arg2[%c4, %c0_25, %c0_26] : memref<8x256x256xf32, #tpu.memory_space<vmem>>, vector<1x256x256xf32>
    %34 = vector.shape_cast %33 : vector<1x256x256xf32> to vector<256x256xf32>
    %cst_27 = arith.constant dense<0.000000e+00> : vector<1x256xf32>
    %35 = tpu.matmul %32, %34, %cst_27 {dimension_numbers = #tpu.dot_dimension_numbers<[1], [0], [0], [1], [0, 0, 1, 1], [], []>} : vector<1x256xf32>, vector<256x256xf32>, vector<1x256xf32> -> vector<1x256xf32>
    %c4_28 = arith.constant 4 : index
    %c0_29 = arith.constant 0 : index
    %36 = vector.load %arg3[%c4_28, %c0_29] : memref<8x256xf32, #tpu.memory_space<vmem>>, vector<1x256xf32>
    %37 = arith.addf %35, %36 : vector<1x256xf32>
    %cst_30 = arith.constant 2.000000e-01 : f32
    %38 = vector.broadcast %cst_30 : f32 to vector<1x256xf32>
    %39 = arith.mulf %38, %37 : vector<1x256xf32>
    %40 = arith.maximumf %37, %39 : vector<1x256xf32>
    %c5 = arith.constant 5 : index
    %c0_31 = arith.constant 0 : index
    %c0_32 = arith.constant 0 : index
    %41 = vector.load %arg2[%c5, %c0_31, %c0_32] : memref<8x256x256xf32, #tpu.memory_space<vmem>>, vector<1x256x256xf32>
    %42 = vector.shape_cast %41 : vector<1x256x256xf32> to vector<256x256xf32>
    %cst_33 = arith.constant dense<0.000000e+00> : vector<1x256xf32>
    %43 = tpu.matmul %40, %42, %cst_33 {dimension_numbers = #tpu.dot_dimension_numbers<[1], [0], [0], [1], [0, 0, 1, 1], [], []>} : vector<1x256xf32>, vector<256x256xf32>, vector<1x256xf32> -> vector<1x256xf32>
    %c5_34 = arith.constant 5 : index
    %c0_35 = arith.constant 0 : index
    %44 = vector.load %arg3[%c5_34, %c0_35] : memref<8x256xf32, #tpu.memory_space<vmem>>, vector<1x256xf32>
    %45 = arith.addf %43, %44 : vector<1x256xf32>
    %cst_36 = arith.constant 2.000000e-01 : f32
    %46 = vector.broadcast %cst_36 : f32 to vector<1x256xf32>
    %47 = arith.mulf %46, %45 : vector<1x256xf32>
    %48 = arith.maximumf %45, %47 : vector<1x256xf32>
    %c6 = arith.constant 6 : index
    %c0_37 = arith.constant 0 : index
    %c0_38 = arith.constant 0 : index
    %49 = vector.load %arg2[%c6, %c0_37, %c0_38] : memref<8x256x256xf32, #tpu.memory_space<vmem>>, vector<1x256x256xf32>
    %50 = vector.shape_cast %49 : vector<1x256x256xf32> to vector<256x256xf32>
    %cst_39 = arith.constant dense<0.000000e+00> : vector<1x256xf32>
    %51 = tpu.matmul %48, %50, %cst_39 {dimension_numbers = #tpu.dot_dimension_numbers<[1], [0], [0], [1], [0, 0, 1, 1], [], []>} : vector<1x256xf32>, vector<256x256xf32>, vector<1x256xf32> -> vector<1x256xf32>
    %c6_40 = arith.constant 6 : index
    %c0_41 = arith.constant 0 : index
    %52 = vector.load %arg3[%c6_40, %c0_41] : memref<8x256xf32, #tpu.memory_space<vmem>>, vector<1x256xf32>
    %53 = arith.addf %51, %52 : vector<1x256xf32>
    %cst_42 = arith.constant 2.000000e-01 : f32
    %54 = vector.broadcast %cst_42 : f32 to vector<1x256xf32>
    %55 = arith.mulf %54, %53 : vector<1x256xf32>
    %56 = arith.maximumf %53, %55 : vector<1x256xf32>
    %c7 = arith.constant 7 : index
    %c0_43 = arith.constant 0 : index
    %c0_44 = arith.constant 0 : index
    %57 = vector.load %arg2[%c7, %c0_43, %c0_44] : memref<8x256x256xf32, #tpu.memory_space<vmem>>, vector<1x256x256xf32>
    %58 = vector.shape_cast %57 : vector<1x256x256xf32> to vector<256x256xf32>
    %cst_45 = arith.constant dense<0.000000e+00> : vector<1x256xf32>
    %59 = tpu.matmul %56, %58, %cst_45 {dimension_numbers = #tpu.dot_dimension_numbers<[1], [0], [0], [1], [0, 0, 1, 1], [], []>} : vector<1x256xf32>, vector<256x256xf32>, vector<1x256xf32> -> vector<1x256xf32>
    %c7_46 = arith.constant 7 : index
    %c0_47 = arith.constant 0 : index
    %60 = vector.load %arg3[%c7_46, %c0_47] : memref<8x256xf32, #tpu.memory_space<vmem>>, vector<1x256xf32>
    %61 = arith.addf %59, %60 : vector<1x256xf32>
    %cst_48 = arith.constant 2.000000e-01 : f32
    %62 = vector.broadcast %cst_48 : f32 to vector<1x256xf32>
    %63 = arith.mulf %62, %61 : vector<1x256xf32>
    %64 = arith.maximumf %61, %63 : vector<1x256xf32>
    %c0_49 = arith.constant 0 : index
    %c0_50 = arith.constant 0 : index
    %65 = vector.load %arg4[%c0_49, %c0_50] : memref<256x2xf32, #tpu.memory_space<vmem>>, vector<256x2xf32>
    %cst_51 = arith.constant dense<0.000000e+00> : vector<1x2xf32>
    %66 = tpu.matmul %64, %65, %cst_51 {dimension_numbers = #tpu.dot_dimension_numbers<[1], [0], [0], [1], [0, 0, 1, 1], [], []>} : vector<1x256xf32>, vector<256x2xf32>, vector<1x2xf32> -> vector<1x2xf32>
    %cst_52 = arith.constant 1.000000e+00 : f32
    %67 = vector.broadcast %cst_52 : f32 to vector<1x2xf32>
    %68 = arith.addf %66, %67 : vector<1x2xf32>
    %c0_53 = arith.constant 0 : index
    %c0_54 = arith.constant 0 : index
    %69 = vector.load %arg5[%c0_53, %c0_54] : memref<32x2xf32, #tpu.memory_space<vmem>>, vector<32x2xf32>
    %70 = vector.broadcast %68 : vector<1x2xf32> to vector<32x2xf32>
    %71 = arith.mulf %69, %70 : vector<32x2xf32>
    %72 = arith.mulf %71, %71 : vector<32x2xf32>
    %cst_55 = arith.constant dense<0.000000e+00> : vector<32xf32>
    %73 = vector.multi_reduction <add>, %72, %cst_55 [1] : vector<32x2xf32> to vector<32xf32>
    %74 = vector.shape_cast %73 : vector<32xf32> to vector<32x1xf32>
    %cst_56 = arith.constant 9.99999993E-9 : f32
    %75 = vector.broadcast %cst_56 : f32 to vector<32x1xf32>
    %76 = arith.addf %74, %75 : vector<32x1xf32>
    %77 = math.rsqrt %76 : vector<32x1xf32>
    %78 = vector.broadcast %77 : vector<32x1xf32> to vector<32x2xf32>
    %79 = arith.mulf %71, %78 : vector<32x2xf32>
    %c0_57 = arith.constant 0 : index
    %c0_58 = arith.constant 0 : index
    %80 = vector.load %arg6[%c0_57, %c0_58] : memref<32x2xf32, #tpu.memory_space<vmem>>, vector<32x2xf32>
    tpu.vector_store %arg6[%c0_57, %c0_58], %79 {strides = array<i32>} : memref<32x2xf32, #tpu.memory_space<vmem>>, vector<32x2xf32>,
    return
  }
  func.func @transform_0(%arg0: i32) -> (i32, i32) {
    %c0_i32 = arith.constant 0 : i32
    %c0_i32_0 = arith.constant 0 : i32
    %c0_i32_1 = arith.constant 0 : i32
    return %c0_i32, %c0_i32_0 : i32, i32
  }
  func.func @transform_1(%arg0: i32) -> (i32, i32, i32) {
    %c0_i32 = arith.constant 0 : i32
    %c0_i32_0 = arith.constant 0 : i32
    %c0_i32_1 = arith.constant 0 : i32
    %c0_i32_2 = arith.constant 0 : i32
    return %c0_i32, %c0_i32_0, %c0_i32_1 : i32, i32, i32
  }
  func.func @transform_2(%arg0: i32) -> (i32, i32) {
    %c0_i32 = arith.constant 0 : i32
    %c0_i32_0 = arith.constant 0 : i32
    %c0_i32_1 = arith.constant 0 : i32
    return %c0_i32, %c0_i32_0 : i32, i32
  }
  func.func @transform_3(%arg0: i32) -> (i32, i32) {
    %c0_i32 = arith.constant 0 : i32
    %c0_i32_0 = arith.constant 0 : i32
    %c0_i32_1 = arith.constant 0 : i32
    return %c0_i32, %c0_i32_0 : i32, i32
  }
  func.func @transform_4(%arg0: i32) -> (i32, i32) {
    %c0_i32 = arith.constant 0 : i32
    %c0_i32_0 = arith.constant 0 : i32
    %c0_i32_1 = arith.constant 0 : i32
    return %c0_i32, %c0_i32_0 : i32, i32
  }
  func.func @transform_5(%arg0: i32) -> (i32, i32) {
    %c0_i32 = arith.constant 0 : i32
    %c0_i32_0 = arith.constant 0 : i32
    %c0_i32_1 = arith.constant 0 : i32
    return %c0_i32, %c0_i32_0 : i32, i32
  }
}

module attributes {stable_mosaic.version = 11 : i64} {
  func.func @synth_kernel(%arg0: i32, %arg1: i32, %arg2: memref<1x2x256xf32, #tpu.memory_space<vmem>>, %arg3: memref<1x1x256xf32, #tpu.memory_space<vmem>>, %arg4: memref<1x3x256xf32, #tpu.memory_space<vmem>>, %arg5: memref<32x2xf32, #tpu.memory_space<vmem>>, %arg6: memref<32x1xf32, #tpu.memory_space<vmem>>, %arg7: memref<3x32xf32, #tpu.memory_space<vmem>>, %arg8: memref<3x1xf32, #tpu.memory_space<vmem>>, %arg9: memref<1x3x256xf32, #tpu.memory_space<vmem>>) attributes {dimension_semantics = [#tpu.dimension_semantics<parallel>, #tpu.dimension_semantics<parallel>], iteration_bounds = array<i64: 2, 1>, scalar_prefetch = 0 : i64, scratch_operands = 0 : i64, tpu.core_type = #tpu.core_type<tc>, window_params = [{transform_indices = @transform_0, window_bounds = array<i64: 1, 2, 256>}, {transform_indices = @transform_1, window_bounds = array<i64: 1, 1, 256>}, {transform_indices = @transform_2, window_bounds = array<i64: 1, 3, 256>}, {pipeline_mode = #tpu.pipeline_mode<synchronous>, transform_indices = @transform_3, window_bounds = array<i64: 32, 2>}, {pipeline_mode = #tpu.pipeline_mode<synchronous>, transform_indices = @transform_4, window_bounds = array<i64: 32, 1>}, {pipeline_mode = #tpu.pipeline_mode<synchronous>, transform_indices = @transform_5, window_bounds = array<i64: 3, 32>}, {pipeline_mode = #tpu.pipeline_mode<synchronous>, transform_indices = @transform_6, window_bounds = array<i64: 3, 1>}, {transform_indices = @transform_7, window_bounds = array<i64: 1, 3, 256>}]} {
    %c0 = arith.constant 0 : index
    %c0_0 = arith.constant 0 : index
    %c0_1 = arith.constant 0 : index
    %0 = vector.load %arg2[%c0, %c0_0, %c0_1] : memref<1x2x256xf32, #tpu.memory_space<vmem>>, vector<1x2x256xf32>
    %1 = vector.shape_cast %0 : vector<1x2x256xf32> to vector<2x256xf32>
    %c0_2 = arith.constant 0 : index
    %c0_3 = arith.constant 0 : index
    %2 = vector.load %arg5[%c0_2, %c0_3] : memref<32x2xf32, #tpu.memory_space<vmem>>, vector<32x2xf32>
    %cst = arith.constant dense<0.000000e+00> : vector<32x256xf32>
    %3 = tpu.matmul %2, %1, %cst {dimension_numbers = #tpu.dot_dimension_numbers<[1], [0], [0], [1], [0, 0, 1, 1], [], []>} : vector<32x2xf32>, vector<2x256xf32>, vector<32x256xf32> -> vector<32x256xf32>
    %c0_4 = arith.constant 0 : index
    %c0_5 = arith.constant 0 : index
    %4 = vector.load %arg6[%c0_4, %c0_5] : memref<32x1xf32, #tpu.memory_space<vmem>>, vector<32x1xf32>
    %5 = vector.broadcast %4 : vector<32x1xf32> to vector<32x256xf32>
    %6 = arith.addf %3, %5 : vector<32x256xf32>
    %cst_6 = arith.constant 2.000000e-01 : f32
    %7 = vector.broadcast %cst_6 : f32 to vector<32x256xf32>
    %8 = arith.mulf %7, %6 : vector<32x256xf32>
    %9 = arith.maximumf %6, %8 : vector<32x256xf32>
    %c0_7 = arith.constant 0 : index
    %c0_8 = arith.constant 0 : index
    %10 = vector.load %arg7[%c0_7, %c0_8] : memref<3x32xf32, #tpu.memory_space<vmem>>, vector<3x32xf32>
    %cst_9 = arith.constant dense<0.000000e+00> : vector<3x256xf32>
    %11 = tpu.matmul %10, %9, %cst_9 {dimension_numbers = #tpu.dot_dimension_numbers<[1], [0], [0], [1], [0, 0, 1, 1], [], []>} : vector<3x32xf32>, vector<32x256xf32>, vector<3x256xf32> -> vector<3x256xf32>
    %c0_10 = arith.constant 0 : index
    %c0_11 = arith.constant 0 : index
    %12 = vector.load %arg8[%c0_10, %c0_11] : memref<3x1xf32, #tpu.memory_space<vmem>>, vector<3x1xf32>
    %13 = vector.broadcast %12 : vector<3x1xf32> to vector<3x256xf32>
    %14 = arith.addf %11, %13 : vector<3x256xf32>
    %c0_12 = arith.constant 0 : index
    %c0_13 = arith.constant 0 : index
    %c0_14 = arith.constant 0 : index
    %15 = vector.load %arg3[%c0_12, %c0_13, %c0_14] : memref<1x1x256xf32, #tpu.memory_space<vmem>>, vector<1x1x256xf32>
    %16 = vector.shape_cast %15 : vector<1x1x256xf32> to vector<1x256xf32>
    %c0_15 = arith.constant 0 : index
    %c0_16 = arith.constant 0 : index
    %c0_17 = arith.constant 0 : index
    %17 = vector.load %arg4[%c0_15, %c0_16, %c0_17] : memref<1x3x256xf32, #tpu.memory_space<vmem>>, vector<1x3x256xf32>
    %18 = vector.shape_cast %17 : vector<1x3x256xf32> to vector<3x256xf32>
    %19 = arith.subf %14, %18 : vector<3x256xf32>
    %20 = vector.broadcast %16 : vector<1x256xf32> to vector<3x256xf32>
    %21 = arith.mulf %20, %19 : vector<3x256xf32>
    %22 = arith.addf %18, %21 : vector<3x256xf32>
    %c0_18 = arith.constant 0 : index
    %c0_19 = arith.constant 0 : index
    %c0_20 = arith.constant 0 : index
    %23 = vector.load %arg9[%c0_18, %c0_19, %c0_20] : memref<1x3x256xf32, #tpu.memory_space<vmem>>, vector<1x3x256xf32>
    %24 = vector.shape_cast %23 : vector<1x3x256xf32> to vector<3x256xf32>
    %25 = vector.shape_cast %22 : vector<3x256xf32> to vector<1x3x256xf32>
    tpu.vector_store %arg9[%c0_18, %c0_19, %c0_20], %25 {strides = array<i32>} : memref<1x3x256xf32, #tpu.memory_space<vmem>>, vector<1x3x256xf32>,
    return
  }
  func.func @transform_0(%arg0: i32, %arg1: i32) -> (i32, i32, i32) {
    %c0_i32 = arith.constant 0 : i32
    %c0_i32_0 = arith.constant 0 : i32
    return %arg0, %c0_i32, %arg1 : i32, i32, i32
  }
  func.func @transform_1(%arg0: i32, %arg1: i32) -> (i32, i32, i32) {
    %c0_i32 = arith.constant 0 : i32
    %c0_i32_0 = arith.constant 0 : i32
    return %arg0, %c0_i32, %arg1 : i32, i32, i32
  }
  func.func @transform_2(%arg0: i32, %arg1: i32) -> (i32, i32, i32) {
    %c0_i32 = arith.constant 0 : i32
    %c0_i32_0 = arith.constant 0 : i32
    return %arg0, %c0_i32, %arg1 : i32, i32, i32
  }
  func.func @transform_3(%arg0: i32, %arg1: i32) -> (i32, i32) {
    %c0_i32 = arith.constant 0 : i32
    %c0_i32_0 = arith.constant 0 : i32
    %c0_i32_1 = arith.constant 0 : i32
    return %c0_i32, %c0_i32_0 : i32, i32
  }
  func.func @transform_4(%arg0: i32, %arg1: i32) -> (i32, i32) {
    %c0_i32 = arith.constant 0 : i32
    %c0_i32_0 = arith.constant 0 : i32
    %c0_i32_1 = arith.constant 0 : i32
    return %c0_i32, %c0_i32_0 : i32, i32
  }
  func.func @transform_5(%arg0: i32, %arg1: i32) -> (i32, i32) {
    %c0_i32 = arith.constant 0 : i32
    %c0_i32_0 = arith.constant 0 : i32
    %c0_i32_1 = arith.constant 0 : i32
    return %c0_i32, %c0_i32_0 : i32, i32
  }
  func.func @transform_6(%arg0: i32, %arg1: i32) -> (i32, i32) {
    %c0_i32 = arith.constant 0 : i32
    %c0_i32_0 = arith.constant 0 : i32
    %c0_i32_1 = arith.constant 0 : i32
    return %c0_i32, %c0_i32_0 : i32, i32
  }
  func.func @transform_7(%arg0: i32, %arg1: i32) -> (i32, i32, i32) {
    %c0_i32 = arith.constant 0 : i32
    %c0_i32_0 = arith.constant 0 : i32
    return %arg0, %c0_i32, %arg1 : i32, i32, i32
  }
}

</mosaic_0001>

<llo_original>
// kernel: align_model_forward.3
$region0: #{align_model_forward.3}
  #allocation0 [shape = 'u32[]', space=smem, size = 0x4, offset = 0x4, fixed_abs, tag = 'smem constant byte address 0x4 - core index']
  #allocation1 [shape = 'u32[144,128]{1,0:T(1,128)}', space=vmem, size = 0x12000, scoped, tag = 'internal scratch']
  %s0 = inlined_call_operand.vmem [shape: f32[2,2,256], index: 0, kind: input, shape index: {}]
  %s1 = inlined_call_operand.vmem [shape: f32[2,1,256], index: 1, kind: input, shape index: {}]
  %s2 = inlined_call_operand.vmem [shape: f32[2,3,256], index: 2, kind: input, shape index: {}]
  %s3 = inlined_call_operand.vmem [shape: f32[32,2], index: 3, kind: input, shape index: {}]
  %s4 = inlined_call_operand.vmem [shape: f32[32,1], index: 4, kind: input, shape index: {}]
  %s5 = inlined_call_operand.vmem [shape: f32[3,32], index: 5, kind: input, shape index: {}]
  %s6 = inlined_call_operand.vmem [shape: f32[3,1], index: 6, kind: input, shape index: {}]
  %s7 = inlined_call_operand.vmem [shape: f32[2,3,256], index: 7, kind: output, shape index: {}]
  %s8 = sld [smem:[#allocation0]]
  $region61: #{align_model_forward.3} parent=0
    _
  %s10 = ssub.s32 1, %s8
  %s11 = scalar_select 0, %s10, %s8
  loop: start=0, step=1, limit=4
  $region2: #{align_model_forward.3} parent=0 // loop_pre_header
    _
  $region3: #{align_model_forward.3} parent=0 // loop_header
    %s13 = sphi 0, %s17
    %p14 = scmp.ge.s32.totalorder %s13, 4
    %s20 = sphi 0, %s32
    %s21 = sphi 0, %s28
    %s22 = sphi 0, %s20
    %s23 = sphi 0, %s21
    %s24 = sphi 0, %s22
    %s25 = sphi 0, %s23
    %s37 = sphi 0, %s39
    %s40 = sphi 0, %s37
    %s41 = sphi 0, %s40
    %s57 = sphi 0, %s41
    %s65 = sphi 0, %s67
    %s68 = sphi 0, %s65
    %s69 = sphi 0, %s68
    %s85 = sphi 0, %s69
    %s93 = sphi 0, %s95
    %s96 = sphi 0, %s93
    %s97 = sphi 0, %s96
    %s113 = sphi 0, %s97
    %s117 = sphi 0, %s117
    %s119 = sphi 0, %s117
    %s120 = sphi 0, %s119
    %s134 = sphi 0, %s120
    %s138 = sphi 0, %s138
    %s140 = sphi 0, %s138
    %s141 = sphi 0, %s140
    %s155 = sphi 0, %s141
    %s159 = sphi 0, %s159
    %s161 = sphi 0, %s159
    %s162 = sphi 0, %s161
    %s176 = sphi 0, %s162
    %s180 = sphi 0, %s180
    %s182 = sphi 0, %s180
    %s183 = sphi 0, %s182
    %s197 = sphi 0, %s183
    %s205 = sphi 0, %s207
    %s208 = sphi 0, %s205
    %s209 = sphi 0, %s208
    %s225 = sphi 0, %s209
  $region4: #{align_model_forward.3} parent=0 // loop_header_branch
    %16 = sbr.rel (%p14) target = $region8
  $region5: #{align_model_forward.3} parent=0 // loop_body
    %s18 = ssub.s32 %s13, 1
    %s19 = ssub.s32 %s13, 2
    %s26 = sadd.s32 1, %s21
    %p27 = scmp.ge.s32.totalorder %s26, 1
    %s28 = scalar_select %p27, 0, %s26
    %s29 = sadd.s32 1, %s20
    %s30 = scalar_select %p27, %s29, %s20
    %p31 = scmp.ge.s32.totalorder %s30, 2
    %s32 = scalar_select %p31, 0, %s30
    %s33 = ssub.s32 %s20, %s32
    %s34 = ssub.s32 %s21, %s28
    %s35 = sor.u32 %s33, %s34
    %p36 = scmp.eq.s32.totalorder %s35, 0
    %s38 = sadd.s32 %s37, 1
    %s39 = scalar_select %p36, %s37, %s38
    %p42 = pneg %p36
    %p43 = scmp.eq.s32.totalorder %s13, 1
    %p44 = por %p42, %p43
    %p45 = scmp.ne.s32.totalorder %s37, %s40
    %p46 = scmp.eq.s32.totalorder %s13, 0
    %p47 = por %p45, %p46
    %p48 = scmp.ne.s32.totalorder %s37, %s40
    %p49 = scmp.eq.s32.totalorder %s18, 1
    %p50 = por %p48, %p49
    %p51 = scmp.ne.s32.totalorder %s40, %s41
    %p52 = scmp.eq.s32.totalorder %s18, 0
    %p53 = por %p51, %p52
    %p54 = scmp.ne.s32.totalorder %s40, %s41
    %p55 = scmp.eq.s32.totalorder %s19, 1
    %p56 = por %p54, %p55
    %p58 = scmp.ne.s32.totalorder %s41, %s57
    %p59 = scmp.eq.s32.totalorder %s19, 0
    %p60 = por %p58, %p59
    %s61 = ssub.s32 %s20, %s32
    %s62 = ssub.s32 %s21, %s28
    %s63 = sor.u32 %s61, %s62
    %p64 = scmp.eq.s32.totalorder %s63, 0
    %s66 = sadd.s32 %s65, 1
    %s67 = scalar_select %p64, %s65, %s66
    %p70 = pneg %p64
    %p71 = scmp.eq.s32.totalorder %s13, 1
    %p72 = por %p70, %p71
    %p73 = scmp.ne.s32.totalorder %s65, %s68
    %p74 = scmp.eq.s32.totalorder %s13, 0
    %p75 = por %p73, %p74
    %p76 = scmp.ne.s32.totalorder %s65, %s68
    %p77 = scmp.eq.s32.totalorder %s18, 1
    %p78 = por %p76, %p77
    %p79 = scmp.ne.s32.totalorder %s68, %s69
    %p80 = scmp.eq.s32.totalorder %s18, 0
    %p81 = por %p79, %p80
    %p82 = scmp.ne.s32.totalorder %s68, %s69
    %p83 = scmp.eq.s32.totalorder %s19, 1
    %p84 = por %p82, %p83
    %p86 = scmp.ne.s32.totalorder %s69, %s85
    %p87 = scmp.eq.s32.totalorder %s19, 0
    %p88 = por %p86, %p87
    %s89 = ssub.s32 %s20, %s32
    %s90 = ssub.s32 %s21, %s28
    %s91 = sor.u32 %s89, %s90
    %p92 = scmp.eq.s32.totalorder %s91, 0
    %s94 = sadd.s32 %s93, 1
    %s95 = scalar_select %p92, %s93, %s94
    %p98 = pneg %p92
    %p99 = scmp.eq.s32.totalorder %s13, 1
    %p100 = por %p98, %p99
    %p101 = scmp.ne.s32.totalorder %s93, %s96
    %p102 = scmp.eq.s32.totalorder %s13, 0
    %p103 = por %p101, %p102
    %p104 = scmp.ne.s32.totalorder %s93, %s96
    %p105 = scmp.eq.s32.totalorder %s18, 1
    %p106 = por %p104, %p105
    %p107 = scmp.ne.s32.totalorder %s96, %s97
    %p108 = scmp.eq.s32.totalorder %s18, 0
    %p109 = por %p107, %p108
    %p110 = scmp.ne.s32.totalorder %s96, %s97
    %p111 = scmp.eq.s32.totalorder %s19, 1
    %p112 = por %p110, %p111
    %p114 = scmp.ne.s32.totalorder %s97, %s113
    %p115 = scmp.eq.s32.totalorder %s19, 0
    %p116 = por %p114, %p115
    %s118 = sadd.s32 %s117, 1
    %p121 = scmp.eq.s32.totalorder %s13, 1
    %p122 = scmp.ne.s32.totalorder %s117, %s119
    %p123 = scmp.eq.s32.totalorder %s13, 0
    %p124 = por %p122, %p123
    %p125 = scmp.ne.s32.totalorder %s117, %s119
    %p126 = scmp.eq.s32.totalorder %s18, 1
    %p127 = por %p125, %p126
    %p128 = scmp.ne.s32.totalorder %s119, %s120
    %p129 = scmp.eq.s32.totalorder %s18, 0
    %p130 = por %p128, %p129
    %p131 = scmp.ne.s32.totalorder %s119, %s120
    %p132 = scmp.eq.s32.totalorder %s19, 1
    %p133 = por %p131, %p132
    %p135 = scmp.ne.s32.totalorder %s120, %s134
    %p136 = scmp.eq.s32.totalorder %s19, 0
    %p137 = por %p135, %p136
    %s139 = sadd.s32 %s138, 1
    %p142 = scmp.eq.s32.totalorder %s13, 1
    %p143 = scmp.ne.s32.totalorder %s138, %s140
    %p144 = scmp.eq.s32.totalorder %s13, 0
    %p145 = por %p143, %p144
    %p146 = scmp.ne.s32.totalorder %s138, %s140
    %p147 = scmp.eq.s32.totalorder %s18, 1
    %p148 = por %p146, %p147
    %p149 = scmp.ne.s32.totalorder %s140, %s141
    %p150 = scmp.eq.s32.totalorder %s18, 0
    %p151 = por %p149, %p150
    %p152 = scmp.ne.s32.totalorder %s140, %s141
    %p153 = scmp.eq.s32.totalorder %s19, 1
    %p154 = por %p152, %p153
    %p156 = scmp.ne.s32.totalorder %s141, %s155
    %p157 = scmp.eq.s32.totalorder %s19, 0
    %p158 = por %p156, %p157
    %s160 = sadd.s32 %s159, 1
    %p163 = scmp.eq.s32.totalorder %s13, 1
    %p164 = scmp.ne.s32.totalorder %s159, %s161
    %p165 = scmp.eq.s32.totalorder %s13, 0
    %p166 = por %p164, %p165
    %p167 = scmp.ne.s32.totalorder %s159, %s161
    %p168 = scmp.eq.s32.totalorder %s18, 1
    %p169 = por %p167, %p168
    %p170 = scmp.ne.s32.totalorder %s161, %s162
    %p171 = scmp.eq.s32.totalorder %s18, 0
    %p172 = por %p170, %p171
    %p173 = scmp.ne.s32.totalorder %s161, %s162
    %p174 = scmp.eq.s32.totalorder %s19, 1
    %p175 = por %p173, %p174
    %p177 = scmp.ne.s32.totalorder %s162, %s176
    %p178 = scmp.eq.s32.totalorder %s19, 0
    %p179 = por %p177, %p178
    %s181 = sadd.s32 %s180, 1
    %p184 = scmp.eq.s32.totalorder %s13, 1
    %p185 = scmp.ne.s32.totalorder %s180, %s182
    %p186 = scmp.eq.s32.totalorder %s13, 0
    %p187 = por %p185, %p186
    %p188 = scmp.ne.s32.totalorder %s180, %s182
    %p189 = scmp.eq.s32.totalorder %s18, 1
    %p190 = por %p188, %p189
    %p191 = scmp.ne.s32.totalorder %s182, %s183
    %p192 = scmp.eq.s32.totalorder %s18, 0
    %p193 = por %p191, %p192
    %p194 = scmp.ne.s32.totalorder %s182, %s183
    %p195 = scmp.eq.s32.totalorder %s19, 1
    %p196 = por %p194, %p195
    %p198 = scmp.ne.s32.totalorder %s183, %s197
    %p199 = scmp.eq.s32.totalorder %s19, 0
    %p200 = por %p198, %p199
    %s201 = ssub.s32 %s20, %s32
    %s202 = ssub.s32 %s21, %s28
    %s203 = sor.u32 %s201, %s202
    %p204 = scmp.eq.s32.totalorder %s203, 0
    %s206 = sadd.s32 %s205, 1
    %s207 = scalar_select %p204, %s205, %s206
    %p210 = pneg %p204
    %p211 = scmp.eq.s32.totalorder %s13, 1
    %p212 = por %p210, %p211
    %p213 = scmp.ne.s32.totalorder %s205, %s208
    %p214 = scmp.eq.s32.totalorder %s13, 0
    %p215 = por %p213, %p214
    %p216 = scmp.ne.s32.totalorder %s205, %s208
    %p217 = scmp.eq.s32.totalorder %s18, 1
    %p218 = por %p216, %p217
    %p219 = scmp.ne.s32.totalorder %s208, %s209
    %p220 = scmp.eq.s32.totalorder %s18, 0
    %p221 = por %p219, %p220
    %p222 = scmp.ne.s32.totalorder %s208, %s209
    %p223 = scmp.eq.s32.totalorder %s19, 1
    %p224 = por %p222, %p223
    %p226 = scmp.ne.s32.totalorder %s209, %s225
    %p227 = scmp.eq.s32.totalorder %s19, 0
    %p228 = por %p226, %p227
    %p229 = scmp.le.s32.totalorder 1, %s13
    %p230 = scmp.lt.s32.totalorder %s13, 3
    %p231 = pnand %p229, %p230
    %p232 = pneg %p231
    // Predicated region
    $region9: #{align_model_forward.3} parent=5 // pred_check
      _
    $region10: #{align_model_forward.3} parent=5 // pred_check_branch
      %234 = sbr.rel (%p231) target = $region12
    $region11: #{align_model_forward.3} parent=5 // pred_region
      %s235 = ssub.s32 %s13, 1
      // Predicated region
      $region13: #{align_model_forward.3} parent=11 // pred_check
        %p236 = pneg %p130
      $region14: #{align_model_forward.3} parent=11 // pred_check_branch
        %238 = sbr.rel (%p236) target = $region16
      $region15: #{align_model_forward.3} parent=11 // pred_region
        _
      $region16: #{align_model_forward.3} parent=11 // pred_fallthru
        _
      // Predicated region
      $region17: #{align_model_forward.3} parent=11 // pred_check
        %p239 = pneg %p151
      $region18: #{align_model_forward.3} parent=11 // pred_check_branch
        %241 = sbr.rel (%p239) target = $region20
      $region19: #{align_model_forward.3} parent=11 // pred_region
        _
      $region20: #{align_model_forward.3} parent=11 // pred_fallthru
        _
      // Predicated region
      $region21: #{align_model_forward.3} parent=11 // pred_check
        %p242 = pneg %p172
      $region22: #{align_model_forward.3} parent=11 // pred_check_branch
        %244 = sbr.rel (%p242) target = $region24
      $region23: #{align_model_forward.3} parent=11 // pred_region
        _
      $region24: #{align_model_forward.3} parent=11 // pred_fallthru
        _
      // Predicated region
      $region25: #{align_model_forward.3} parent=11 // pred_check
        %p245 = pneg %p193
      $region26: #{align_model_forward.3} parent=11 // pred_check_branch
        %247 = sbr.rel (%p245) target = $region28
      $region27: #{align_model_forward.3} parent=11 // pred_region
        _
      $region28: #{align_model_forward.3} parent=11 // pred_fallthru
        _
    $region12: #{align_model_forward.3} parent=5 // pred_fallthru
      _
    %p248 = scmp.lt.s32.totalorder %s13, 2
    // Predicated region
    $region29: #{align_model_forward.3} parent=5 // pred_check
      %p249 = pneg %p248
    $region30: #{align_model_forward.3} parent=5 // pred_check_branch
      %251 = sbr.rel (%p249) target = $region32
    $region31: #{align_model_forward.3} parent=5 // pred_region
      // Predicated region
      $region33: #{align_model_forward.3} parent=31 // pred_check
        %p252 = pneg %p47
      $region34: #{align_model_forward.3} parent=31 // pred_check_branch
        %254 = sbr.rel (%p252) target = $region36
      $region35: #{align_model_forward.3} parent=31 // pred_region
        %s255 = smul.u32 2, %s21
        %p256 = scmp.lt.s32.totalorder %s20, 1
        %s257 = scalar_select %p256, %s20, 1
        %p258 = scmp.lt.s32.totalorder %s255, 1
        %s259 = scalar_select %p258, %s255, 1
        %s260 = smul.addr %s257, 2
        %s261 = sadd.s32 %s259, %s260
        %s262 = smul.addr %s261, 2
        %s263 = scalar_lea.vmem %s0, %s262
        %s264 = smul.u32 2, %s21
      $region36: #{align_model_forward.3} parent=31 // pred_fallthru
        _
      // Predicated region
      $region37: #{align_model_forward.3} parent=31 // pred_check
        %p265 = pneg %p75
      $region38: #{align_model_forward.3} parent=31 // pred_check_branch
        %267 = sbr.rel (%p265) target = $region40
      $region39: #{align_model_forward.3} parent=31 // pred_region
        %s268 = smul.u32 2, %s21
        %p269 = scmp.lt.s32.totalorder %s20, 1
        %s270 = scalar_select %p269, %s20, 1
        %p271 = scmp.lt.s32.totalorder %s268, 1
        %s272 = scalar_select %p271, %s268, 1
        %s273 = smul.addr %s270, 2
        %s274 = sadd.s32 %s272, %s273
        %s275 = scalar_lea.vmem %s1, %s274
        %s276 = smul.u32 2, %s21
      $region40: #{align_model_forward.3} parent=31 // pred_fallthru
        _
      // Predicated region
      $region41: #{align_model_forward.3} parent=31 // pred_check
        %p277 = pneg %p103
      $region42: #{align_model_forward.3} parent=31 // pred_check_branch
        %279 = sbr.rel (%p277) target = $region44
      $region43: #{align_model_forward.3} parent=31 // pred_region
        %s280 = smul.u32 2, %s21
        %p281 = scmp.lt.s32.totalorder %s20, 1
        %s282 = scalar_select %p281, %s20, 1
        %p283 = scmp.lt.s32.totalorder %s280, 1
        %s284 = scalar_select %p283, %s280, 1
        %s285 = smul.addr %s282, 2
        %s286 = sadd.s32 %s284, %s285
        %s287 = smul.addr %s286, 4
        %s288 = scalar_lea.vmem %s2, %s287
        %s289 = smul.u32 2, %s21
      $region44: #{align_model_forward.3} parent=31 // pred_fallthru
        _
    $region32: #{align_model_forward.3} parent=5 // pred_fallthru
      _
    %p290 = scmp.le.s32.totalorder 1, %s13
    %p291 = scmp.lt.s32.totalorder %s13, 3
    %p292 = pnand %p290, %p291
    %p293 = pneg %p292
    // Predicated region
    $region45: #{align_model_forward.3} parent=5 // pred_check
      _
    $region46: #{align_model_forward.3} parent=5 // pred_check_branch
      %295 = sbr.rel (%p292) target = $region48
    $region47: #{align_model_forward.3} parent=5 // pred_region
      %s296 = ssub.s32 %s13, 1
      %s297 = smul.u32 2, %s23
      %p298 = scmp.lt.s32.totalorder %s22, 1
      %s299 = scalar_select %p298, %s22, 1
      %p300 = scmp.lt.s32.totalorder %s297, 1
      %s301 = scalar_select %p300, %s297, 1
      %s302 = smul.addr %s299, 2
      %s303 = sadd.s32 %s301, %s302
      %s304 = smul.addr %s303, 2
      %s305 = scalar_lea.vmem %s0, %s304
      %p306 = pneg %p53
      %p307 = pneg %p50
      %s308 = smul.u32 2, %s23
      %p309 = scmp.lt.s32.totalorder %s22, 1
      %s310 = scalar_select %p309, %s22, 1
      %p311 = scmp.lt.s32.totalorder %s308, 1
      %s312 = scalar_select %p311, %s308, 1
      %s313 = smul.addr %s310, 2
      %s314 = sadd.s32 %s312, %s313
      %s315 = scalar_lea.vmem %s1, %s314
      %p316 = pneg %p81
      %p317 = pneg %p78
      %s318 = smul.u32 2, %s23
      %p319 = scmp.lt.s32.totalorder %s22, 1
      %s320 = scalar_select %p319, %s22, 1
      %p321 = scmp.lt.s32.totalorder %s318, 1
      %s322 = scalar_select %p321, %s318, 1
      %s323 = smul.addr %s320, 2
      %s324 = sadd.s32 %s322, %s323
      %s325 = smul.addr %s324, 4
      %s326 = scalar_lea.vmem %s2, %s325
      %p327 = pneg %p109
      %p328 = pneg %p106
      %p329 = pneg %p130
      %p330 = pneg %p127
      %p331 = pneg %p151
      %p332 = pneg %p148
      %p333 = pneg %p172
      %p334 = pneg %p169
      %p335 = pneg %p193
      %p336 = pneg %p190
      %p337 = pneg %p221
      %p338 = pneg %p218
      %s339 = smul.u32 2, %s23
      %p340 = scmp.lt.s32.totalorder %s22, 1
      %s341 = scalar_select %p340, %s22, 1
      %p342 = scmp.lt.s32.totalorder %s339, 1
      %s343 = scalar_select %p342, %s339, 1
      %s344 = smul.addr %s341, 2
      %s345 = sadd.s32 %s343, %s344
      %s346 = smul.addr %s345, 4
      %s347 = scalar_lea.vmem %s7, %s346
      %s348 = smul.u32 2, %s23
      %p349 = scmp.lt.s32.totalorder %s22, 1
      %s350 = scalar_select %p349, %s22, 1
      %p351 = scmp.lt.s32.totalorder %s348, 1
      %s352 = scalar_select %p351, %s348, 1
      %s353 = smul.addr %s350, 2
      %s354 = sadd.s32 %s352, %s353
      %s355 = smul.addr %s354, 2
      %s356 = scalar_lea.vmem %s0, %s355
      %s357 = smul.u32 2, %s23
      %s358 = smul.u32 2, %s23
      %p359 = scmp.lt.s32.totalorder %s22, 1
      %s360 = scalar_select %p359, %s22, 1
      %p361 = scmp.lt.s32.totalorder %s358, 1
      %s362 = scalar_select %p361, %s358, 1
      %s363 = smul.addr %s360, 2
      %s364 = sadd.s32 %s362, %s363
      %s365 = scalar_lea.vmem %s1, %s364
      %s366 = smul.u32 2, %s23
      %s367 = smul.u32 2, %s23
      %p368 = scmp.lt.s32.totalorder %s22, 1
      %s369 = scalar_select %p368, %s22, 1
      %p370 = scmp.lt.s32.totalorder %s367, 1
      %s371 = scalar_select %p370, %s367, 1
      %s372 = smul.addr %s369, 2
      %s373 = sadd.s32 %s371, %s372
      %s374 = smul.addr %s373, 4
      %s375 = scalar_lea.vmem %s2, %s374
      %s376 = smul.u32 2, %s23
      %s377 = smul.u32 2, %s23
      %p378 = scmp.lt.s32.totalorder %s22, 1
      %s379 = scalar_select %p378, %s22, 1
      %p380 = scmp.lt.s32.totalorder %s377, 1
      %s381 = scalar_select %p380, %s377, 1
      %s382 = smul.addr %s379, 2
      %s383 = sadd.s32 %s381, %s382
      %s384 = smul.addr %s383, 4
      %s385 = scalar_lea.vmem %s7, %s384
      %s386 = smul.u32 2, %s23
      %v387 = vld [vmem:[%s356] sm:$0xf]
      %v388 = vld [vmem:[%s3] sm:$0xff]
      %v389 = vld [vmem:[%s3 + $0x8] sm:$0xff]
      %v390 = vld [vmem:[%s3 + $0x10] sm:$0xff]
      %v391 = vld [vmem:[%s3 + $0x18] sm:$0xff]
      %v392 = vld [vmem:[%s4] sm:$0xff]
      %v393 = vld [vmem:[%s4 + $0x8] sm:$0xff]
      %v394 = vld [vmem:[%s4 + $0x10] sm:$0xff]
      %v395 = vld [vmem:[%s4 + $0x18] sm:$0xff]
      %397 = vset.pattern.permute.xlu0 0
      %398 = vperm.xlu0 %397, %v392
      %v399 = vpop.permute.xlu0 %398
      %402 = vset.pattern.permute.xlu0 0
      %403 = vperm.xlu0 %402, %v393
      %v404 = vpop.permute.xlu0 %403
      %407 = vset.pattern.permute.xlu0 0
      %408 = vperm.xlu0 %407, %v394
      %v409 = vpop.permute.xlu0 %408
      %412 = vset.pattern.permute.xlu0 0
      %413 = vperm.xlu0 %412, %v395
      %v414 = vpop.permute.xlu0 %413
      %v418 = vunpack.c.l.s4 1983009808
      %v419 = vunpack.c.0.s8 %v418
      %v420 = vlaneseq
      %v421 = vshrl.u32 %v420, 7
      %v422 = vsub.s32 %v419, %v421
      %v423 = vrot.slane %v387, %v422
      %v424 = vcombine.high %v423, %v423
      %vm425 = vcmask 15360
      %v427 = vsel %vm425, %v388, 0
      %v430 = vsel %vm425, %v389, 0
      %v433 = vsel %vm425, %v390, 0
      %v436 = vsel %vm425, %v391, 0
      %vm438 = vcmask 1041408
      %v439 = vsel %vm438, %v423, 0
      %v441 = vsel %vm438, %v424, 0
      %443 = vmatprep.subr.mxu0 %v441
      %444 = vmatpush1.msra.mxu0 %v439
      %445 = vmatprep.subr.mxu0 0.0
      %446 = vmatpush1.msra.mxu0 0.0
      %447 = vmatprep.subr.mxu0 0.0
      %448 = vmatpush1.msra.mxu0 0.0
      %449 = vmatprep.subr.mxu0 0.0
      %450 = vmatpush1.msra.mxu0 0.0
      %451 = vmatprep.subr.mxu0 0.0
      %452 = vmatpush1.msra.mxu0 0.0
      %453 = vmatprep.subr.mxu0 0.0
      %454 = vmatpush1.msra.mxu0 0.0
      %455 = vmatprep.subr.mxu0 0.0
      %456 = vmatpush1.msra.mxu0 0.0
      %457 = vmatprep.subr.mxu0 0.0
      %458 = vmatpush1.msra.mxu0 0.0
      %459 = vmatprep.subr.mxu0 0.0
      %460 = vmatpush1.msra.mxu0 0.0
      %461 = vmatprep.subr.mxu0 0.0
      %462 = vmatpush1.msra.mxu0 0.0
      %463 = vmatprep.subr.mxu0 0.0
      %464 = vmatpush1.msra.mxu0 0.0
      %465 = vmatprep.subr.mxu0 0.0
      %466 = vmatpush1.msra.mxu0 0.0
      %467 = vmatprep.subr.mxu0 0.0
      %468 = vmatpush1.msra.mxu0 0.0
      %469 = vmatprep.subr.mxu0 0.0
      %470 = vmatpush1.msra.mxu0 0.0
      %471 = vmatprep.subr.mxu0 0.0
      %472 = vmatpush1.msra.mxu0 0.0
      %473 = vmatprep.subr.mxu0 0.0
      %474 = vmatpush1.msra.mxu0 0.0
      %475 = vmatprep.subr.mxu0 0.0
      %476 = vmatpush1.msra.mxu0 0.0
      %477 = vmatprep.subr.mxu0 0.0
      %478 = vmatpush1.msra.mxu0 0.0
      %479 = vmatprep.subr.mxu0 0.0
      %480 = vmatpush1.msra.mxu0 0.0
      %481 = vmatprep.subr.mxu0 0.0
      %482 = vmatpush1.msra.mxu0 0.0
      %483 = vmatprep.subr.mxu0 0.0
      %484 = vmatpush1.msra.mxu0 0.0
      %485 = vmatprep.subr.mxu0 0.0
      %486 = vmatpush1.msra.mxu0 0.0
      %487 = vmatprep.subr.mxu0 0.0
      %488 = vmatpush1.msra.mxu0 0.0
      %489 = vmatprep.subr.mxu0 0.0
      %490 = vmatpush1.msra.mxu0 0.0
      %491 = vmatprep.subr.mxu0 0.0
      %492 = vmatpush1.msra.mxu0 0.0
      %493 = vmatprep.subr.mxu0 0.0
      %494 = vmatpush1.msra.mxu0 0.0
      %495 = vmatprep.subr.mxu0 0.0
      %496 = vmatpush1.msra.mxu0 0.0
      %497 = vmatprep.subr.mxu0 0.0
      %498 = vmatpush1.msra.mxu0 0.0
      %499 = vmatprep.subr.mxu0 0.0
      %500 = vmatpush1.msra.mxu0 0.0
      %501 = vmatprep.subr.mxu0 0.0
      %502 = vmatpush1.msra.mxu0 0.0
      %503 = vmatprep.subr.mxu0 0.0
      %504 = vmatpush1.msra.mxu0 0.0
      %505 = vmatprep.subr.mxu0 0.0
      %506 = vmatpush1.msra.mxu0 0.0
      %507 = vmatprep.mubr.f32.mxu0 0.0
      %508 = vmatmul.mubr.f32.gmra.mrb[0].mxu0 %v427
      %v509 = vpop.f32.mrb[0].mxu0
      %v510 = vadd.f32 %v399, %v509
      %v511 = vpop.f32.mrb[0].mxu0
      %v512 = vadd.f32 %v399, %v511
      %513 = vmatprep.mubr.f32.mxu0 0.0
      %514 = vmatmul.mubr.f32.gmra.mrb[0].mxu0 %v430
      %v515 = vpop.f32.mrb[0].mxu0
      %v516 = vadd.f32 %v404, %v515
      %v517 = vpop.f32.mrb[0].mxu0
      %v518 = vadd.f32 %v404, %v517
      %519 = vmatprep.mubr.f32.mxu0 0.0
      %520 = vmatmul.mubr.f32.gmra.mrb[0].mxu0 %v433
      %v521 = vpop.f32.mrb[0].mxu0
      %v522 = vadd.f32 %v409, %v521
      %v523 = vpop.f32.mrb[0].mxu0
      %v524 = vadd.f32 %v409, %v523
      %525 = vmatprep.mubr.f32.mxu0 0.0
      %526 = vmatmul.mubr.f32.gmra.mrb[0].mxu0 %v436
      %v527 = vpop.f32.mrb[0].mxu0
      %v528 = vadd.f32 %v414, %v527
      %v529 = vpop.f32.mrb[0].mxu0
      %v530 = vadd.f32 %v414, %v529
      %531 = vdwg.mxu0
      %v532 = vmul.f32 %v510, 0.2
      %v533 = vmul.f32 %v512, 0.2
      %v534 = vmul.f32 %v516, 0.2
      %v535 = vmul.f32 %v518, 0.2
      %v536 = vmul.f32 %v522, 0.2
      %v537 = vmul.f32 %v524, 0.2
      %v538 = vmul.f32 %v528, 0.2
      %v539 = vmul.f32 %v530, 0.2
      %v540 = vmax.f32 %v510, %v532
      %v541 = vmax.f32 %v512, %v533
      %v542 = vmax.f32 %v516, %v534
      %v543 = vmax.f32 %v518, %v535
      %v544 = vmax.f32 %v522, %v536
      %v545 = vmax.f32 %v524, %v537
      %v546 = vmax.f32 %v528, %v538
      %v547 = vmax.f32 %v530, %v539
      %v548 = vld [vmem:[%s5] sm:$0x7]
      %v549 = vld [vmem:[%s6] sm:$0x7]
      %551 = vset.pattern.permute.xlu0 0
      %552 = vperm.xlu0 %551, %v549
      %v553 = vpop.permute.xlu0 %552
      %vm555 = vcmask 261120
      %v557 = vsel %vm555, %v548, 0
      %559 = vmatprep.subr.mxu0 %v541
      %560 = vmatpush1.msra.mxu0 %v540
      %561 = vmatprep.subr.mxu0 %v543
      %562 = vmatpush1.msra.mxu0 %v542
      %563 = vmatprep.subr.mxu0 %v545
      %564 = vmatpush1.msra.mxu0 %v544
      %565 = vmatprep.subr.mxu0 %v547
      %566 = vmatpush1.msra.mxu0 %v546
      %567 = vmatprep.subr.mxu0 0.0
      %568 = vmatpush1.msra.mxu0 0.0
      %569 = vmatprep.subr.mxu0 0.0
      %570 = vmatpush1.msra.mxu0 0.0
      %571 = vmatprep.subr.mxu0 0.0
      %572 = vmatpush1.msra.mxu0 0.0
      %573 = vmatprep.subr.mxu0 0.0
      %574 = vmatpush1.msra.mxu0 0.0
      %575 = vmatprep.subr.mxu0 0.0
      %576 = vmatpush1.msra.mxu0 0.0
      %577 = vmatprep.subr.mxu0 0.0
      %578 = vmatpush1.msra.mxu0 0.0
      %579 = vmatprep.subr.mxu0 0.0
      %580 = vmatpush1.msra.mxu0 0.0
      %581 = vmatprep.subr.mxu0 0.0
      %582 = vmatpush1.msra.mxu0 0.0
      %583 = vmatprep.subr.mxu0 0.0
      %584 = vmatpush1.msra.mxu0 0.0
      %585 = vmatprep.subr.mxu0 0.0
      %586 = vmatpush1.msra.mxu0 0.0
      %587 = vmatprep.subr.mxu0 0.0
      %588 = vmatpush1.msra.mxu0 0.0
      %589 = vmatprep.subr.mxu0 0.0
      %590 = vmatpush1.msra.mxu0 0.0
      %591 = vmatprep.subr.mxu0 0.0
      %592 = vmatpush1.msra.mxu0 0.0
      %593 = vmatprep.subr.mxu0 0.0
      %594 = vmatpush1.msra.mxu0 0.0
      %595 = vmatprep.subr.mxu0 0.0
      %596 = vmatpush1.msra.mxu0 0.0
      %597 = vmatprep.subr.mxu0 0.0
      %598 = vmatpush1.msra.mxu0 0.0
      %599 = vmatprep.subr.mxu0 0.0
      %600 = vmatpush1.msra.mxu0 0.0
      %601 = vmatprep.subr.mxu0 0.0
      %602 = vmatpush1.msra.mxu0 0.0
      %603 = vmatprep.subr.mxu0 0.0
      %604 = vmatpush1.msra.mxu0 0.0
      %605 = vmatprep.subr.mxu0 0.0
      %606 = vmatpush1.msra.mxu0 0.0
      %607 = vmatprep.subr.mxu0 0.0
      %608 = vmatpush1.msra.mxu0 0.0
      %609 = vmatprep.subr.mxu0 0.0
      %610 = vmatpush1.msra.mxu0 0.0
      %611 = vmatprep.subr.mxu0 0.0
      %612 = vmatpush1.msra.mxu0 0.0
      %613 = vmatprep.subr.mxu0 0.0
      %614 = vmatpush1.msra.mxu0 0.0
      %615 = vmatprep.subr.mxu0 0.0
      %616 = vmatpush1.msra.mxu0 0.0
      %617 = vmatprep.subr.mxu0 0.0
      %618 = vmatpush1.msra.mxu0 0.0
      %619 = vmatprep.subr.mxu0 0.0
      %620 = vmatpush1.msra.mxu0 0.0
      %621 = vmatprep.subr.mxu0 0.0
      %622 = vmatpush1.msra.mxu0 0.0
      %623 = vmatprep.mubr.f32.mxu0 0.0
      %624 = vmatmul.mubr.f32.gmra.mrb[0].mxu0 %v557
      %v625 = vpop.f32.mrb[0].mxu0
      %v626 = vadd.f32 %v553, %v625
      %v627 = vpop.f32.mrb[0].mxu0
      %v628 = vadd.f32 %v553, %v627
      %629 = vdwg.mxu0
      %v630 = vld [vmem:[%s365] sm:$0x3]
      %v631 = vld [vmem:[%s375] sm:$0x77]
      %v633 = vcombine.high %v631, %v631
      %v635 = vsub.f32 %v626, %v631
      %v636 = vsub.f32 %v628, %v633
      %v638 = vlaneseq
      %v639 = vshrl.u32 %v638, 7
      %v640 = vsub.s32 0, %v639
      %v641 = vrot.slane %v630, %v640
      %v642 = vlaneseq
      %v643 = vshrl.u32 %v642, 7
      %v644 = vsub.s32 1, %v643
      %v645 = vrot.slane %v630, %v644
      %v648 = vmul.f32 %v641, %v635
      %v649 = vmul.f32 %v645, %v636
      %v652 = vcombine.low %v648, %v649
      %v654 = vadd.f32 %v631, %v652
      %655 = vst [vmem:[%s385] sm:$0x77] %v654
      %s656 = smul.u32 2, %s23
      %p657 = scmp.lt.s32.totalorder %s22, 1
      %s658 = scalar_select %p657, %s22, 1
      %p659 = scmp.lt.s32.totalorder %s656, 1
      %s660 = scalar_select %p659, %s656, 1
      %s661 = smul.addr %s658, 2
      %s662 = sadd.s32 %s660, %s661
      %s663 = smul.addr %s662, 4
      %s664 = scalar_lea.vmem %s7, %s663
      // Predicated region
      $region49: #{align_model_forward.3} parent=47 // pred_check
        %p665 = pneg %p218
      $region50: #{align_model_forward.3} parent=47 // pred_check_branch
        %667 = sbr.rel (%p665) target = $region52
      $region51: #{align_model_forward.3} parent=47 // pred_region
        %s668 = smul.u32 2, %s23
      $region52: #{align_model_forward.3} parent=47 // pred_fallthru
        _
    $region48: #{align_model_forward.3} parent=5 // pred_fallthru
      _
    %p669 = scmp.le.s32.totalorder 2, %s13
    // Predicated region
    $region53: #{align_model_forward.3} parent=5 // pred_check
      %p670 = pneg %p669
    $region54: #{align_model_forward.3} parent=5 // pred_check_branch
      %672 = sbr.rel (%p670) target = $region56
    $region55: #{align_model_forward.3} parent=5 // pred_region
      %s673 = ssub.s32 %s13, 2
      // Predicated region
      $region57: #{align_model_forward.3} parent=55 // pred_check
        %p674 = pneg %p224
      $region58: #{align_model_forward.3} parent=55 // pred_check_branch
        %676 = sbr.rel (%p674) target = $region60
      $region59: #{align_model_forward.3} parent=55 // pred_region
        %s677 = smul.u32 2, %s25
        %p678 = scmp.lt.s32.totalorder %s24, 1
        %s679 = scalar_select %p678, %s24, 1
        %p680 = scmp.lt.s32.totalorder %s677, 1
        %s681 = scalar_select %p680, %s677, 1
        %s682 = smul.addr %s679, 2
        %s683 = sadd.s32 %s681, %s682
        %s684 = smul.addr %s683, 4
        %s685 = scalar_lea.vmem %s7, %s684
      $region60: #{align_model_forward.3} parent=55 // pred_fallthru
        _
    $region56: #{align_model_forward.3} parent=5 // pred_fallthru
      _
  $region6: #{align_model_forward.3} parent=0 // loop_footer
    %s17 = sadd.s32 1, %s13
  $region7: #{align_model_forward.3} parent=0 // loop_footer_branch
    %12 = sbr.rel target = $region3
  $region8: #{align_model_forward.3} parent=0 // loop_exit
    _

// kernel: align_model_forward.2
$region0: #{align_model_forward.2}
  #allocation0 [shape = 'u32[]', space=smem, size = 0x4, offset = 0x4, fixed_abs, tag = 'smem constant byte address 0x4 - core index']
  #allocation1 [shape = 'u32[144,128]{1,0:T(1,128)}', space=vmem, size = 0x12000, scoped, tag = 'internal scratch']
  %s0 = inlined_call_operand.vmem [shape: f32[1,256], index: 0, kind: input, shape index: {}]
  %s1 = inlined_call_operand.vmem [shape: f32[8,256,256], index: 1, kind: input, shape index: {}]
  %s2 = inlined_call_operand.vmem [shape: f32[8,256], index: 2, kind: input, shape index: {}]
  %s3 = inlined_call_operand.vmem [shape: f32[256,2], index: 3, kind: input, shape index: {}]
  %s4 = inlined_call_operand.vmem [shape: f32[32,2], index: 4, kind: input, shape index: {}]
  %s5 = inlined_call_operand.vmem [shape: f32[32,2], index: 5, kind: output, shape index: {}]
  %s6 = sld [smem:[#allocation0]]
  $region30: #{align_model_forward.2} parent=0
    _
  %s8 = ssub.s32 1, %s6
  %s9 = scalar_select 0, %s8, %s6
  // Predicated region
  $region2: #{align_model_forward.2} parent=0 // pred_check
    _
  $region3: #{align_model_forward.2} parent=0 // pred_check_branch
    %11 = sbr.rel (0) target = $region5
  $region4: #{align_model_forward.2} parent=0 // pred_region
    _
  $region5: #{align_model_forward.2} parent=0 // pred_fallthru
    _
  // Predicated region
  $region6: #{align_model_forward.2} parent=0 // pred_check
    _
  $region7: #{align_model_forward.2} parent=0 // pred_check_branch
    %13 = sbr.rel (0) target = $region9
  $region8: #{align_model_forward.2} parent=0 // pred_region
    _
  $region9: #{align_model_forward.2} parent=0 // pred_fallthru
    _
  // Predicated region
  $region10: #{align_model_forward.2} parent=0 // pred_check
    _
  $region11: #{align_model_forward.2} parent=0 // pred_check_branch
    %15 = sbr.rel (0) target = $region13
  $region12: #{align_model_forward.2} parent=0 // pred_region
    _
  $region13: #{align_model_forward.2} parent=0 // pred_fallthru
    _
  // Predicated region
  $region14: #{align_model_forward.2} parent=0 // pred_check
    _
  $region15: #{align_model_forward.2} parent=0 // pred_check_branch
    %17 = sbr.rel (0) target = $region17
  $region16: #{align_model_forward.2} parent=0 // pred_region
    _
  $region17: #{align_model_forward.2} parent=0 // pred_fallthru
    _
  // Predicated region
  $region18: #{align_model_forward.2} parent=0 // pred_check
    _
  $region19: #{align_model_forward.2} parent=0 // pred_check_branch
    %19 = sbr.rel (0) target = $region21
  $region20: #{align_model_forward.2} parent=0 // pred_region
    _
  $region21: #{align_model_forward.2} parent=0 // pred_fallthru
    _
  %v20 = vld [vmem:[%s0] sm:$0x3]
  %v21 = vld [vmem:[%s1] sm:$0xff]
  %v22 = vld [vmem:[%s1 + $0x8] sm:$0xff]
  %v23 = vld [vmem:[%s1 + $0x10] sm:$0xff]
  %v24 = vld [vmem:[%s1 + $0x18] sm:$0xff]
  %v25 = vld [vmem:[%s1 + $0x20] sm:$0xff]
  %v26 = vld [vmem:[%s1 + $0x28] sm:$0xff]
  %v27 = vld [vmem:[%s1 + $0x30] sm:$0xff]
  %v28 = vld [vmem:[%s1 + $0x38] sm:$0xff]
  %v29 = vld [vmem:[%s1 + $0x40] sm:$0xff]
  %v30 = vld [vmem:[%s1 + $0x48] sm:$0xff]
  %v31 = vld [vmem:[%s1 + $0x50] sm:$0xff]
  %v32 = vld [vmem:[%s1 + $0x58] sm:$0xff]
  %v33 = vld [vmem:[%s1 + $0x60] sm:$0xff]
  %v34 = vld [vmem:[%s1 + $0x68] sm:$0xff]
  %v35 = vld [vmem:[%s1 + $0x70] sm:$0xff]
  %v36 = vld [vmem:[%s1 + $0x78] sm:$0xff]
  %v37 = vld [vmem:[%s1 + $0x80] sm:$0xff]
  %v38 = vld [vmem:[%s1 + $0x88] sm:$0xff]
  %v39 = vld [vmem:[%s1 + $0x90] sm:$0xff]
  %v40 = vld [vmem:[%s1 + $0x98] sm:$0xff]
  %v41 = vld [vmem:[%s1 + $0xa0] sm:$0xff]
  %v42 = vld [vmem:[%s1 + $0xa8] sm:$0xff]
  %v43 = vld [vmem:[%s1 + $0xb0] sm:$0xff]
  %v44 = vld [vmem:[%s1 + $0xb8] sm:$0xff]
  %v45 = vld [vmem:[%s1 + $0xc0] sm:$0xff]
  %v46 = vld [vmem:[%s1 + $0xc8] sm:$0xff]
  %v47 = vld [vmem:[%s1 + $0xd0] sm:$0xff]
  %v48 = vld [vmem:[%s1 + $0xd8] sm:$0xff]
  %v49 = vld [vmem:[%s1 + $0xe0] sm:$0xff]
  %v50 = vld [vmem:[%s1 + $0xe8] sm:$0xff]
  %v51 = vld [vmem:[%s1 + $0xf0] sm:$0xff]
  %v52 = vld [vmem:[%s1 + $0xf8] sm:$0xff]
  %v53 = vld [vmem:[%s1 + $0x100] sm:$0xff]
  %v54 = vld [vmem:[%s1 + $0x108] sm:$0xff]
  %v55 = vld [vmem:[%s1 + $0x110] sm:$0xff]
  %v56 = vld [vmem:[%s1 + $0x118] sm:$0xff]
  %v57 = vld [vmem:[%s1 + $0x120] sm:$0xff]
  %v58 = vld [vmem:[%s1 + $0x128] sm:$0xff]
  %v59 = vld [vmem:[%s1 + $0x130] sm:$0xff]
  %v60 = vld [vmem:[%s1 + $0x138] sm:$0xff]
  %v61 = vld [vmem:[%s1 + $0x140] sm:$0xff]
  %v62 = vld [vmem:[%s1 + $0x148] sm:$0xff]
  %v63 = vld [vmem:[%s1 + $0x150] sm:$0xff]
  %v64 = vld [vmem:[%s1 + $0x158] sm:$0xff]
  %v65 = vld [vmem:[%s1 + $0x160] sm:$0xff]
  %v66 = vld [vmem:[%s1 + $0x168] sm:$0xff]
  %v67 = vld [vmem:[%s1 + $0x170] sm:$0xff]
  %v68 = vld [vmem:[%s1 + $0x178] sm:$0xff]
  %v69 = vld [vmem:[%s1 + $0x180] sm:$0xff]
  %v70 = vld [vmem:[%s1 + $0x188] sm:$0xff]
  %v71 = vld [vmem:[%s1 + $0x190] sm:$0xff]
  %v72 = vld [vmem:[%s1 + $0x198] sm:$0xff]
  %v73 = vld [vmem:[%s1 + $0x1a0] sm:$0xff]
  %v74 = vld [vmem:[%s1 + $0x1a8] sm:$0xff]
  %v75 = vld [vmem:[%s1 + $0x1b0] sm:$0xff]
  %v76 = vld [vmem:[%s1 + $0x1b8] sm:$0xff]
  %v77 = vld [vmem:[%s1 + $0x1c0] sm:$0xff]
  %v78 = vld [vmem:[%s1 + $0x1c8] sm:$0xff]
  %v79 = vld [vmem:[%s1 + $0x1d0] sm:$0xff]
  %v80 = vld [vmem:[%s1 + $0x1d8] sm:$0xff]
  %v81 = vld [vmem:[%s1 + $0x1e0] sm:$0xff]
  %v82 = vld [vmem:[%s1 + $0x1e8] sm:$0xff]
  %v83 = vld [vmem:[%s1 + $0x1f0] sm:$0xff]
  %v84 = vld [vmem:[%s1 + $0x1f8] sm:$0xff]
  %v85 = vld [vmem:[%s2] ss:$8 sm:$0x3]
  %v87 = vlaneseq
  %v88 = vshrl.u32 %v87, 7
  %v89 = vsub.s32 0, %v88
  %v90 = vrot.slane %v20, %v89
  %v91 = vlaneseq
  %v92 = vshrl.u32 %v91, 7
  %v93 = vsub.s32 1, %v92
  %v94 = vrot.slane %v20, %v93
  %v98 = vlaneseq
  %v99 = vshrl.u32 %v98, 7
  %v100 = vsub.s32 0, %v99
  %v101 = vrot.slane %v85, %v100
  %v102 = vlaneseq
  %v103 = vshrl.u32 %v102, 7
  %v104 = vsub.s32 1, %v103
  %v105 = vrot.slane %v85, %v104
  %108 = vmatprep.subr.mxu0 %v22
  %109 = vmatpush1.msra.mxu0 %v21
  %110 = vmatprep.subr.mxu0 %v24
  %111 = vmatpush1.msra.mxu0 %v23
  %112 = vmatprep.subr.mxu0 %v26
  %113 = vmatpush1.msra.mxu0 %v25
  %114 = vmatprep.subr.mxu0 %v28
  %115 = vmatpush1.msra.mxu0 %v27
  %116 = vmatprep.subr.mxu0 %v30
  %117 = vmatpush1.msra.mxu0 %v29
  %118 = vmatprep.subr.mxu0 %v32
  %119 = vmatpush1.msra.mxu0 %v31
  %120 = vmatprep.subr.mxu0 %v34
  %121 = vmatpush1.msra.mxu0 %v33
  %122 = vmatprep.subr.mxu0 %v36
  %123 = vmatpush1.msra.mxu0 %v35
  %124 = vmatprep.subr.mxu0 %v38
  %125 = vmatpush1.msra.mxu0 %v37
  %126 = vmatprep.subr.mxu0 %v40
  %127 = vmatpush1.msra.mxu0 %v39
  %128 = vmatprep.subr.mxu0 %v42
  %129 = vmatpush1.msra.mxu0 %v41
  %130 = vmatprep.subr.mxu0 %v44
  %131 = vmatpush1.msra.mxu0 %v43
  %132 = vmatprep.subr.mxu0 %v46
  %133 = vmatpush1.msra.mxu0 %v45
  %134 = vmatprep.subr.mxu0 %v48
  %135 = vmatpush1.msra.mxu0 %v47
  %136 = vmatprep.subr.mxu0 %v50
  %137 = vmatpush1.msra.mxu0 %v49
  %138 = vmatprep.subr.mxu0 %v52
  %139 = vmatpush1.msra.mxu0 %v51
  %140 = vmatprep.subr.mxu0 %v54
  %141 = vmatpush1.msra.mxu0 %v53
  %142 = vmatprep.subr.mxu0 %v56
  %143 = vmatpush1.msra.mxu0 %v55
  %144 = vmatprep.subr.mxu0 %v58
  %145 = vmatpush1.msra.mxu0 %v57
  %146 = vmatprep.subr.mxu0 %v60
  %147 = vmatpush1.msra.mxu0 %v59
  %148 = vmatprep.subr.mxu0 %v62
  %149 = vmatpush1.msra.mxu0 %v61
  %150 = vmatprep.subr.mxu0 %v64
  %151 = vmatpush1.msra.mxu0 %v63
  %152 = vmatprep.subr.mxu0 %v66
  %153 = vmatpush1.msra.mxu0 %v65
  %154 = vmatprep.subr.mxu0 %v68
  %155 = vmatpush1.msra.mxu0 %v67
  %156 = vmatprep.subr.mxu0 %v70
  %157 = vmatpush1.msra.mxu0 %v69
  %158 = vmatprep.subr.mxu0 %v72
  %159 = vmatpush1.msra.mxu0 %v71
  %160 = vmatprep.subr.mxu0 %v74
  %161 = vmatpush1.msra.mxu0 %v73
  %162 = vmatprep.subr.mxu0 %v76
  %163 = vmatpush1.msra.mxu0 %v75
  %164 = vmatprep.subr.mxu0 %v78
  %165 = vmatpush1.msra.mxu0 %v77
  %166 = vmatprep.subr.mxu0 %v80
  %167 = vmatpush1.msra.mxu0 %v79
  %168 = vmatprep.subr.mxu0 %v82
  %169 = vmatpush1.msra.mxu0 %v81
  %170 = vmatprep.subr.mxu0 %v84
  %171 = vmatpush1.msra.mxu0 %v83
  %172 = vmatprep.mubr.f32.mxu0 %v94
  %173 = vmatmul.mubr.f32.gmra.mrb[0].mxu0 %v90
  %v174 = vpop.f32.mrb[0].mxu0
  %v175 = vadd.f32 %v101, %v174
  %v176 = vpop.f32.mrb[0].mxu0
  %v177 = vadd.f32 %v105, %v176
  %178 = vdwg.mxu0
  %v179 = vmul.f32 %v175, 0.2
  %v180 = vmul.f32 %v177, 0.2
  %v181 = vmax.f32 %v175, %v179
  %v182 = vmax.f32 %v177, %v180
  %s183 = scalar_lea.vmem %s1, 512
  %v184 = vld [vmem:[%s183] sm:$0xff]
  %v185 = vld [vmem:[%s183 + $0x8] sm:$0xff]
  %v186 = vld [vmem:[%s183 + $0x10] sm:$0xff]
  %v187 = vld [vmem:[%s183 + $0x18] sm:$0xff]
  %v188 = vld [vmem:[%s183 + $0x20] sm:$0xff]
  %v189 = vld [vmem:[%s183 + $0x28] sm:$0xff]
  %v190 = vld [vmem:[%s183 + $0x30] sm:$0xff]
  %v191 = vld [vmem:[%s183 + $0x38] sm:$0xff]
  %v192 = vld [vmem:[%s183 + $0x40] sm:$0xff]
  %v193 = vld [vmem:[%s183 + $0x48] sm:$0xff]
  %v194 = vld [vmem:[%s183 + $0x50] sm:$0xff]
  %v195 = vld [vmem:[%s183 + $0x58] sm:$0xff]
  %v196 = vld [vmem:[%s183 + $0x60] sm:$0xff]
  %v197 = vld [vmem:[%s183 + $0x68] sm:$0xff]
  %v198 = vld [vmem:[%s183 + $0x70] sm:$0xff]
  %v199 = vld [vmem:[%s183 + $0x78] sm:$0xff]
  %v200 = vld [vmem:[%s183 + $0x80] sm:$0xff]
  %v201 = vld [vmem:[%s183 + $0x88] sm:$0xff]
  %v202 = vld [vmem:[%s183 + $0x90] sm:$0xff]
  %v203 = vld [vmem:[%s183 + $0x98] sm:$0xff]
  %v204 = vld [vmem:[%s183 + $0xa0] sm:$0xff]
  %v205 = vld [vmem:[%s183 + $0xa8] sm:$0xff]
  %v206 = vld [vmem:[%s183 + $0xb0] sm:$0xff]
  %v207 = vld [vmem:[%s183 + $0xb8] sm:$0xff]
  %v208 = vld [vmem:[%s183 + $0xc0] sm:$0xff]
  %v209 = vld [vmem:[%s183 + $0xc8] sm:$0xff]
  %v210 = vld [vmem:[%s183 + $0xd0] sm:$0xff]
  %v211 = vld [vmem:[%s183 + $0xd8] sm:$0xff]
  %v212 = vld [vmem:[%s183 + $0xe0] sm:$0xff]
  %v213 = vld [vmem:[%s183 + $0xe8] sm:$0xff]
  %v214 = vld [vmem:[%s183 + $0xf0] sm:$0xff]
  %v215 = vld [vmem:[%s183 + $0xf8] sm:$0xff]
  %v216 = vld [vmem:[%s183 + $0x100] sm:$0xff]
  %v217 = vld [vmem:[%s183 + $0x108] sm:$0xff]
  %v218 = vld [vmem:[%s183 + $0x110] sm:$0xff]
  %v219 = vld [vmem:[%s183 + $0x118] sm:$0xff]
  %v220 = vld [vmem:[%s183 + $0x120] sm:$0xff]
  %v221 = vld [vmem:[%s183 + $0x128] sm:$0xff]
  %v222 = vld [vmem:[%s183 + $0x130] sm:$0xff]
  %v223 = vld [vmem:[%s183 + $0x138] sm:$0xff]
  %v224 = vld [vmem:[%s183 + $0x140] sm:$0xff]
  %v225 = vld [vmem:[%s183 + $0x148] sm:$0xff]
  %v226 = vld [vmem:[%s183 + $0x150] sm:$0xff]
  %v227 = vld [vmem:[%s183 + $0x158] sm:$0xff]
  %v228 = vld [vmem:[%s183 + $0x160] sm:$0xff]
  %v229 = vld [vmem:[%s183 + $0x168] sm:$0xff]
  %v230 = vld [vmem:[%s183 + $0x170] sm:$0xff]
  %v231 = vld [vmem:[%s183 + $0x178] sm:$0xff]
  %v232 = vld [vmem:[%s183 + $0x180] sm:$0xff]
  %v233 = vld [vmem:[%s183 + $0x188] sm:$0xff]
  %v234 = vld [vmem:[%s183 + $0x190] sm:$0xff]
  %v235 = vld [vmem:[%s183 + $0x198] sm:$0xff]
  %v236 = vld [vmem:[%s183 + $0x1a0] sm:$0xff]
  %v237 = vld [vmem:[%s183 + $0x1a8] sm:$0xff]
  %v238 = vld [vmem:[%s183 + $0x1b0] sm:$0xff]
  %v239 = vld [vmem:[%s183 + $0x1b8] sm:$0xff]
  %v240 = vld [vmem:[%s183 + $0x1c0] sm:$0xff]
  %v241 = vld [vmem:[%s183 + $0x1c8] sm:$0xff]
  %v242 = vld [vmem:[%s183 + $0x1d0] sm:$0xff]
  %v243 = vld [vmem:[%s183 + $0x1d8] sm:$0xff]
  %v244 = vld [vmem:[%s183 + $0x1e0] sm:$0xff]
  %v245 = vld [vmem:[%s183 + $0x1e8] sm:$0xff]
  %v246 = vld [vmem:[%s183 + $0x1f0] sm:$0xff]
  %v247 = vld [vmem:[%s183 + $0x1f8] sm:$0xff]
  %s248 = scalar_lea.vmem %s2, 1
  %v249 = vld [vmem:[%s248] ss:$8 sm:$0x3]
  %v251 = vlaneseq
  %v252 = vshrl.u32 %v251, 7
  %v253 = vsub.s32 0, %v252
  %v254 = vrot.slane %v249, %v253
  %v255 = vlaneseq
  %v256 = vshrl.u32 %v255, 7
  %v257 = vsub.s32 1, %v256
  %v258 = vrot.slane %v249, %v257
  %261 = vmatprep.subr.mxu0 %v185
  %262 = vmatpush1.msra.mxu0 %v184
  %263 = vmatprep.subr.mxu0 %v187
  %264 = vmatpush1.msra.mxu0 %v186
  %265 = vmatprep.subr.mxu0 %v189
  %266 = vmatpush1.msra.mxu0 %v188
  %267 = vmatprep.subr.mxu0 %v191
  %268 = vmatpush1.msra.mxu0 %v190
  %269 = vmatprep.subr.mxu0 %v193
  %270 = vmatpush1.msra.mxu0 %v192
  %271 = vmatprep.subr.mxu0 %v195
  %272 = vmatpush1.msra.mxu0 %v194
  %273 = vmatprep.subr.mxu0 %v197
  %274 = vmatpush1.msra.mxu0 %v196
  %275 = vmatprep.subr.mxu0 %v199
  %276 = vmatpush1.msra.mxu0 %v198
  %277 = vmatprep.subr.mxu0 %v201
  %278 = vmatpush1.msra.mxu0 %v200
  %279 = vmatprep.subr.mxu0 %v203
  %280 = vmatpush1.msra.mxu0 %v202
  %281 = vmatprep.subr.mxu0 %v205
  %282 = vmatpush1.msra.mxu0 %v204
  %283 = vmatprep.subr.mxu0 %v207
  %284 = vmatpush1.msra.mxu0 %v206
  %285 = vmatprep.subr.mxu0 %v209
  %286 = vmatpush1.msra.mxu0 %v208
  %287 = vmatprep.subr.mxu0 %v211
  %288 = vmatpush1.msra.mxu0 %v210
  %289 = vmatprep.subr.mxu0 %v213
  %290 = vmatpush1.msra.mxu0 %v212
  %291 = vmatprep.subr.mxu0 %v215
  %292 = vmatpush1.msra.mxu0 %v214
  %293 = vmatprep.subr.mxu0 %v217
  %294 = vmatpush1.msra.mxu0 %v216
  %295 = vmatprep.subr.mxu0 %v219
  %296 = vmatpush1.msra.mxu0 %v218
  %297 = vmatprep.subr.mxu0 %v221
  %298 = vmatpush1.msra.mxu0 %v220
  %299 = vmatprep.subr.mxu0 %v223
  %300 = vmatpush1.msra.mxu0 %v222
  %301 = vmatprep.subr.mxu0 %v225
  %302 = vmatpush1.msra.mxu0 %v224
  %303 = vmatprep.subr.mxu0 %v227
  %304 = vmatpush1.msra.mxu0 %v226
  %305 = vmatprep.subr.mxu0 %v229
  %306 = vmatpush1.msra.mxu0 %v228
  %307 = vmatprep.subr.mxu0 %v231
  %308 = vmatpush1.msra.mxu0 %v230
  %309 = vmatprep.subr.mxu0 %v233
  %310 = vmatpush1.msra.mxu0 %v232
  %311 = vmatprep.subr.mxu0 %v235
  %312 = vmatpush1.msra.mxu0 %v234
  %313 = vmatprep.subr.mxu0 %v237
  %314 = vmatpush1.msra.mxu0 %v236
  %315 = vmatprep.subr.mxu0 %v239
  %316 = vmatpush1.msra.mxu0 %v238
  %317 = vmatprep.subr.mxu0 %v241
  %318 = vmatpush1.msra.mxu0 %v240
  %319 = vmatprep.subr.mxu0 %v243
  %320 = vmatpush1.msra.mxu0 %v242
  %321 = vmatprep.subr.mxu0 %v245
  %322 = vmatpush1.msra.mxu0 %v244
  %323 = vmatprep.subr.mxu0 %v247
  %324 = vmatpush1.msra.mxu0 %v246
  %325 = vmatprep.mubr.f32.mxu0 %v182
  %326 = vmatmul.mubr.f32.gmra.mrb[0].mxu0 %v181
  %v327 = vpop.f32.mrb[0].mxu0
  %v328 = vadd.f32 %v254, %v327
  %v329 = vpop.f32.mrb[0].mxu0
  %v330 = vadd.f32 %v258, %v329
  %331 = vdwg.mxu0
  %v332 = vmul.f32 %v328, 0.2
  %v333 = vmul.f32 %v330, 0.2
  %v334 = vmax.f32 %v328, %v332
  %v335 = vmax.f32 %v330, %v333
  %s336 = scalar_lea.vmem %s1, 1024
  %v337 = vld [vmem:[%s336] sm:$0xff]
  %v338 = vld [vmem:[%s336 + $0x8] sm:$0xff]
  %v339 = vld [vmem:[%s336 + $0x10] sm:$0xff]
  %v340 = vld [vmem:[%s336 + $0x18] sm:$0xff]
  %v341 = vld [vmem:[%s336 + $0x20] sm:$0xff]
  %v342 = vld [vmem:[%s336 + $0x28] sm:$0xff]
  %v343 = vld [vmem:[%s336 + $0x30] sm:$0xff]
  %v344 = vld [vmem:[%s336 + $0x38] sm:$0xff]
  %v345 = vld [vmem:[%s336 + $0x40] sm:$0xff]
  %v346 = vld [vmem:[%s336 + $0x48] sm:$0xff]
  %v347 = vld [vmem:[%s336 + $0x50] sm:$0xff]
  %v348 = vld [vmem:[%s336 + $0x58] sm:$0xff]
  %v349 = vld [vmem:[%s336 + $0x60] sm:$0xff]
  %v350 = vld [vmem:[%s336 + $0x68] sm:$0xff]
  %v351 = vld [vmem:[%s336 + $0x70] sm:$0xff]
  %v352 = vld [vmem:[%s336 + $0x78] sm:$0xff]
  %v353 = vld [vmem:[%s336 + $0x80] sm:$0xff]
  %v354 = vld [vmem:[%s336 + $0x88] sm:$0xff]
  %v355 = vld [vmem:[%s336 + $0x90] sm:$0xff]
  %v356 = vld [vmem:[%s336 + $0x98] sm:$0xff]
  %v357 = vld [vmem:[%s336 + $0xa0] sm:$0xff]
  %v358 = vld [vmem:[%s336 + $0xa8] sm:$0xff]
  %v359 = vld [vmem:[%s336 + $0xb0] sm:$0xff]
  %v360 = vld [vmem:[%s336 + $0xb8] sm:$0xff]
  %v361 = vld [vmem:[%s336 + $0xc0] sm:$0xff]
  %v362 = vld [vmem:[%s336 + $0xc8] sm:$0xff]
  %v363 = vld [vmem:[%s336 + $0xd0] sm:$0xff]
  %v364 = vld [vmem:[%s336 + $0xd8] sm:$0xff]
  %v365 = vld [vmem:[%s336 + $0xe0] sm:$0xff]
  %v366 = vld [vmem:[%s336 + $0xe8] sm:$0xff]
  %v367 = vld [vmem:[%s336 + $0xf0] sm:$0xff]
  %v368 = vld [vmem:[%s336 + $0xf8] sm:$0xff]
  %v369 = vld [vmem:[%s336 + $0x100] sm:$0xff]
  %v370 = vld [vmem:[%s336 + $0x108] sm:$0xff]
  %v371 = vld [vmem:[%s336 + $0x110] sm:$0xff]
  %v372 = vld [vmem:[%s336 + $0x118] sm:$0xff]
  %v373 = vld [vmem:[%s336 + $0x120] sm:$0xff]
  %v374 = vld [vmem:[%s336 + $0x128] sm:$0xff]
  %v375 = vld [vmem:[%s336 + $0x130] sm:$0xff]
  %v376 = vld [vmem:[%s336 + $0x138] sm:$0xff]
  %v377 = vld [vmem:[%s336 + $0x140] sm:$0xff]
  %v378 = vld [vmem:[%s336 + $0x148] sm:$0xff]
  %v379 = vld [vmem:[%s336 + $0x150] sm:$0xff]
  %v380 = vld [vmem:[%s336 + $0x158] sm:$0xff]
  %v381 = vld [vmem:[%s336 + $0x160] sm:$0xff]
  %v382 = vld [vmem:[%s336 + $0x168] sm:$0xff]
  %v383 = vld [vmem:[%s336 + $0x170] sm:$0xff]
  %v384 = vld [vmem:[%s336 + $0x178] sm:$0xff]
  %v385 = vld [vmem:[%s336 + $0x180] sm:$0xff]
  %v386 = vld [vmem:[%s336 + $0x188] sm:$0xff]
  %v387 = vld [vmem:[%s336 + $0x190] sm:$0xff]
  %v388 = vld [vmem:[%s336 + $0x198] sm:$0xff]
  %v389 = vld [vmem:[%s336 + $0x1a0] sm:$0xff]
  %v390 = vld [vmem:[%s336 + $0x1a8] sm:$0xff]
  %v391 = vld [vmem:[%s336 + $0x1b0] sm:$0xff]
  %v392 = vld [vmem:[%s336 + $0x1b8] sm:$0xff]
  %v393 = vld [vmem:[%s336 + $0x1c0] sm:$0xff]
  %v394 = vld [vmem:[%s336 + $0x1c8] sm:$0xff]
  %v395 = vld [vmem:[%s336 + $0x1d0] sm:$0xff]
  %v396 = vld [vmem:[%s336 + $0x1d8] sm:$0xff]
  %v397 = vld [vmem:[%s336 + $0x1e0] sm:$0xff]
  %v398 = vld [vmem:[%s336 + $0x1e8] sm:$0xff]
  %v399 = vld [vmem:[%s336 + $0x1f0] sm:$0xff]
  %v400 = vld [vmem:[%s336 + $0x1f8] sm:$0xff]
  %s401 = scalar_lea.vmem %s2, 2
  %v402 = vld [vmem:[%s401] ss:$8 sm:$0x3]
  %v404 = vlaneseq
  %v405 = vshrl.u32 %v404, 7
  %v406 = vsub.s32 0, %v405
  %v407 = vrot.slane %v402, %v406
  %v408 = vlaneseq
  %v409 = vshrl.u32 %v408, 7
  %v410 = vsub.s32 1, %v409
  %v411 = vrot.slane %v402, %v410
  %414 = vmatprep.subr.mxu0 %v338
  %415 = vmatpush1.msra.mxu0 %v337
  %416 = vmatprep.subr.mxu0 %v340
  %417 = vmatpush1.msra.mxu0 %v339
  %418 = vmatprep.subr.mxu0 %v342
  %419 = vmatpush1.msra.mxu0 %v341
  %420 = vmatprep.subr.mxu0 %v344
  %421 = vmatpush1.msra.mxu0 %v343
  %422 = vmatprep.subr.mxu0 %v346
  %423 = vmatpush1.msra.mxu0 %v345
  %424 = vmatprep.subr.mxu0 %v348
  %425 = vmatpush1.msra.mxu0 %v347
  %426 = vmatprep.subr.mxu0 %v350
  %427 = vmatpush1.msra.mxu0 %v349
  %428 = vmatprep.subr.mxu0 %v352
  %429 = vmatpush1.msra.mxu0 %v351
  %430 = vmatprep.subr.mxu0 %v354
  %431 = vmatpush1.msra.mxu0 %v353
  %432 = vmatprep.subr.mxu0 %v356
  %433 = vmatpush1.msra.mxu0 %v355
  %434 = vmatprep.subr.mxu0 %v358
  %435 = vmatpush1.msra.mxu0 %v357
  %436 = vmatprep.subr.mxu0 %v360
  %437 = vmatpush1.msra.mxu0 %v359
  %438 = vmatprep.subr.mxu0 %v362
  %439 = vmatpush1.msra.mxu0 %v361
  %440 = vmatprep.subr.mxu0 %v364
  %441 = vmatpush1.msra.mxu0 %v363
  %442 = vmatprep.subr.mxu0 %v366
  %443 = vmatpush1.msra.mxu0 %v365
  %444 = vmatprep.subr.mxu0 %v368
  %445 = vmatpush1.msra.mxu0 %v367
  %446 = vmatprep.subr.mxu0 %v370
  %447 = vmatpush1.msra.mxu0 %v369
  %448 = vmatprep.subr.mxu0 %v372
  %449 = vmatpush1.msra.mxu0 %v371
  %450 = vmatprep.subr.mxu0 %v374
  %451 = vmatpush1.msra.mxu0 %v373
  %452 = vmatprep.subr.mxu0 %v376
  %453 = vmatpush1.msra.mxu0 %v375
  %454 = vmatprep.subr.mxu0 %v378
  %455 = vmatpush1.msra.mxu0 %v377
  %456 = vmatprep.subr.mxu0 %v380
  %457 = vmatpush1.msra.mxu0 %v379
  %458 = vmatprep.subr.mxu0 %v382
  %459 = vmatpush1.msra.mxu0 %v381
  %460 = vmatprep.subr.mxu0 %v384
  %461 = vmatpush1.msra.mxu0 %v383
  %462 = vmatprep.subr.mxu0 %v386
  %463 = vmatpush1.msra.mxu0 %v385
  %464 = vmatprep.subr.mxu0 %v388
  %465 = vmatpush1.msra.mxu0 %v387
  %466 = vmatprep.subr.mxu0 %v390
  %467 = vmatpush1.msra.mxu0 %v389
  %468 = vmatprep.subr.mxu0 %v392
  %469 = vmatpush1.msra.mxu0 %v391
  %470 = vmatprep.subr.mxu0 %v394
  %471 = vmatpush1.msra.mxu0 %v393
  %472 = vmatprep.subr.mxu0 %v396
  %473 = vmatpush1.msra.mxu0 %v395
  %474 = vmatprep.subr.mxu0 %v398
  %475 = vmatpush1.msra.mxu0 %v397
  %476 = vmatprep.subr.mxu0 %v400
  %477 = vmatpush1.msra.mxu0 %v399
  %478 = vmatprep.mubr.f32.mxu0 %v335
  %479 = vmatmul.mubr.f32.gmra.mrb[0].mxu0 %v334
  %v480 = vpop.f32.mrb[0].mxu0
  %v481 = vadd.f32 %v407, %v480
  %v482 = vpop.f32.mrb[0].mxu0
  %v483 = vadd.f32 %v411, %v482
  %484 = vdwg.mxu0
  %v485 = vmul.f32 %v481, 0.2
  %v486 = vmul.f32 %v483, 0.2
  %v487 = vmax.f32 %v481, %v485
  %v488 = vmax.f32 %v483, %v486
  %s489 = scalar_lea.vmem %s1, 1536
  %v490 = vld [vmem:[%s489] sm:$0xff]
  %v491 = vld [vmem:[%s489 + $0x8] sm:$0xff]
  %v492 = vld [vmem:[%s489 + $0x10] sm:$0xff]
  %v493 = vld [vmem:[%s489 + $0x18] sm:$0xff]
  %v494 = vld [vmem:[%s489 + $0x20] sm:$0xff]
  %v495 = vld [vmem:[%s489 + $0x28] sm:$0xff]
  %v496 = vld [vmem:[%s489 + $0x30] sm:$0xff]
  %v497 = vld [vmem:[%s489 + $0x38] sm:$0xff]
  %v498 = vld [vmem:[%s489 + $0x40] sm:$0xff]
  %v499 = vld [vmem:[%s489 + $0x48] sm:$0xff]
  %v500 = vld [vmem:[%s489 + $0x50] sm:$0xff]
  %v501 = vld [vmem:[%s489 + $0x58] sm:$0xff]
  %v502 = vld [vmem:[%s489 + $0x60] sm:$0xff]
  %v503 = vld [vmem:[%s489 + $0x68] sm:$0xff]
  %v504 = vld [vmem:[%s489 + $0x70] sm:$0xff]
  %v505 = vld [vmem:[%s489 + $0x78] sm:$0xff]
  %v506 = vld [vmem:[%s489 + $0x80] sm:$0xff]
  %v507 = vld [vmem:[%s489 + $0x88] sm:$0xff]
  %v508 = vld [vmem:[%s489 + $0x90] sm:$0xff]
  %v509 = vld [vmem:[%s489 + $0x98] sm:$0xff]
  %v510 = vld [vmem:[%s489 + $0xa0] sm:$0xff]
  %v511 = vld [vmem:[%s489 + $0xa8] sm:$0xff]
  %v512 = vld [vmem:[%s489 + $0xb0] sm:$0xff]
  %v513 = vld [vmem:[%s489 + $0xb8] sm:$0xff]
  %v514 = vld [vmem:[%s489 + $0xc0] sm:$0xff]
  %v515 = vld [vmem:[%s489 + $0xc8] sm:$0xff]
  %v516 = vld [vmem:[%s489 + $0xd0] sm:$0xff]
  %v517 = vld [vmem:[%s489 + $0xd8] sm:$0xff]
  %v518 = vld [vmem:[%s489 + $0xe0] sm:$0xff]
  %v519 = vld [vmem:[%s489 + $0xe8] sm:$0xff]
  %v520 = vld [vmem:[%s489 + $0xf0] sm:$0xff]
  %v521 = vld [vmem:[%s489 + $0xf8] sm:$0xff]
  %v522 = vld [vmem:[%s489 + $0x100] sm:$0xff]
  %v523 = vld [vmem:[%s489 + $0x108] sm:$0xff]
  %v524 = vld [vmem:[%s489 + $0x110] sm:$0xff]
  %v525 = vld [vmem:[%s489 + $0x118] sm:$0xff]
  %v526 = vld [vmem:[%s489 + $0x120] sm:$0xff]
  %v527 = vld [vmem:[%s489 + $0x128] sm:$0xff]
  %v528 = vld [vmem:[%s489 + $0x130] sm:$0xff]
  %v529 = vld [vmem:[%s489 + $0x138] sm:$0xff]
  %v530 = vld [vmem:[%s489 + $0x140] sm:$0xff]
  %v531 = vld [vmem:[%s489 + $0x148] sm:$0xff]
  %v532 = vld [vmem:[%s489 + $0x150] sm:$0xff]
  %v533 = vld [vmem:[%s489 + $0x158] sm:$0xff]
  %v534 = vld [vmem:[%s489 + $0x160] sm:$0xff]
  %v535 = vld [vmem:[%s489 + $0x168] sm:$0xff]
  %v536 = vld [vmem:[%s489 + $0x170] sm:$0xff]
  %v537 = vld [vmem:[%s489 + $0x178] sm:$0xff]
  %v538 = vld [vmem:[%s489 + $0x180] sm:$0xff]
  %v539 = vld [vmem:[%s489 + $0x188] sm:$0xff]
  %v540 = vld [vmem:[%s489 + $0x190] sm:$0xff]
  %v541 = vld [vmem:[%s489 + $0x198] sm:$0xff]
  %v542 = vld [vmem:[%s489 + $0x1a0] sm:$0xff]
  %v543 = vld [vmem:[%s489 + $0x1a8] sm:$0xff]
  %v544 = vld [vmem:[%s489 + $0x1b0] sm:$0xff]
  %v545 = vld [vmem:[%s489 + $0x1b8] sm:$0xff]
  %v546 = vld [vmem:[%s489 + $0x1c0] sm:$0xff]
  %v547 = vld [vmem:[%s489 + $0x1c8] sm:$0xff]
  %v548 = vld [vmem:[%s489 + $0x1d0] sm:$0xff]
  %v549 = vld [vmem:[%s489 + $0x1d8] sm:$0xff]
  %v550 = vld [vmem:[%s489 + $0x1e0] sm:$0xff]
  %v551 = vld [vmem:[%s489 + $0x1e8] sm:$0xff]
  %v552 = vld [vmem:[%s489 + $0x1f0] sm:$0xff]
  %v553 = vld [vmem:[%s489 + $0x1f8] sm:$0xff]
  %s554 = scalar_lea.vmem %s2, 3
  %v555 = vld [vmem:[%s554] ss:$8 sm:$0x3]
  %v557 = vlaneseq
  %v558 = vshrl.u32 %v557, 7
  %v559 = vsub.s32 0, %v558
  %v560 = vrot.slane %v555, %v559
  %v561 = vlaneseq
  %v562 = vshrl.u32 %v561, 7
  %v563 = vsub.s32 1, %v562
  %v564 = vrot.slane %v555, %v563
  %567 = vmatprep.subr.mxu0 %v491
  %568 = vmatpush1.msra.mxu0 %v490
  %569 = vmatprep.subr.mxu0 %v493
  %570 = vmatpush1.msra.mxu0 %v492
  %571 = vmatprep.subr.mxu0 %v495
  %572 = vmatpush1.msra.mxu0 %v494
  %573 = vmatprep.subr.mxu0 %v497
  %574 = vmatpush1.msra.mxu0 %v496
  %575 = vmatprep.subr.mxu0 %v499
  %576 = vmatpush1.msra.mxu0 %v498
  %577 = vmatprep.subr.mxu0 %v501
  %578 = vmatpush1.msra.mxu0 %v500
  %579 = vmatprep.subr.mxu0 %v503
  %580 = vmatpush1.msra.mxu0 %v502
  %581 = vmatprep.subr.mxu0 %v505
  %582 = vmatpush1.msra.mxu0 %v504
  %583 = vmatprep.subr.mxu0 %v507
  %584 = vmatpush1.msra.mxu0 %v506
  %585 = vmatprep.subr.mxu0 %v509
  %586 = vmatpush1.msra.mxu0 %v508
  %587 = vmatprep.subr.mxu0 %v511
  %588 = vmatpush1.msra.mxu0 %v510
  %589 = vmatprep.subr.mxu0 %v513
  %590 = vmatpush1.msra.mxu0 %v512
  %591 = vmatprep.subr.mxu0 %v515
  %592 = vmatpush1.msra.mxu0 %v514
  %593 = vmatprep.subr.mxu0 %v517
  %594 = vmatpush1.msra.mxu0 %v516
  %595 = vmatprep.subr.mxu0 %v519
  %596 = vmatpush1.msra.mxu0 %v518
  %597 = vmatprep.subr.mxu0 %v521
  %598 = vmatpush1.msra.mxu0 %v520
  %599 = vmatprep.subr.mxu0 %v523
  %600 = vmatpush1.msra.mxu0 %v522
  %601 = vmatprep.subr.mxu0 %v525
  %602 = vmatpush1.msra.mxu0 %v524
  %603 = vmatprep.subr.mxu0 %v527
  %604 = vmatpush1.msra.mxu0 %v526
  %605 = vmatprep.subr.mxu0 %v529
  %606 = vmatpush1.msra.mxu0 %v528
  %607 = vmatprep.subr.mxu0 %v531
  %608 = vmatpush1.msra.mxu0 %v530
  %609 = vmatprep.subr.mxu0 %v533
  %610 = vmatpush1.msra.mxu0 %v532
  %611 = vmatprep.subr.mxu0 %v535
  %612 = vmatpush1.msra.mxu0 %v534
  %613 = vmatprep.subr.mxu0 %v537
  %614 = vmatpush1.msra.mxu0 %v536
  %615 = vmatprep.subr.mxu0 %v539
  %616 = vmatpush1.msra.mxu0 %v538
  %617 = vmatprep.subr.mxu0 %v541
  %618 = vmatpush1.msra.mxu0 %v540
  %619 = vmatprep.subr.mxu0 %v543
  %620 = vmatpush1.msra.mxu0 %v542
  %621 = vmatprep.subr.mxu0 %v545
  %622 = vmatpush1.msra.mxu0 %v544
  %623 = vmatprep.subr.mxu0 %v547
  %624 = vmatpush1.msra.mxu0 %v546
  %625 = vmatprep.subr.mxu0 %v549
  %626 = vmatpush1.msra.mxu0 %v548
  %627 = vmatprep.subr.mxu0 %v551
  %628 = vmatpush1.msra.mxu0 %v550
  %629 = vmatprep.subr.mxu0 %v553
  %630 = vmatpush1.msra.mxu0 %v552
  %631 = vmatprep.mubr.f32.mxu0 %v488
  %632 = vmatmul.mubr.f32.gmra.mrb[0].mxu0 %v487
  %v633 = vpop.f32.mrb[0].mxu0
  %v634 = vadd.f32 %v560, %v633
  %v635 = vpop.f32.mrb[0].mxu0
  %v636 = vadd.f32 %v564, %v635
  %637 = vdwg.mxu0
  %v638 = vmul.f32 %v634, 0.2
  %v639 = vmul.f32 %v636, 0.2
  %v640 = vmax.f32 %v634, %v638
  %v641 = vmax.f32 %v636, %v639
  %s642 = scalar_lea.vmem %s1, 2048
  %v643 = vld [vmem:[%s642] sm:$0xff]
  %v644 = vld [vmem:[%s642 + $0x8] sm:$0xff]
  %v645 = vld [vmem:[%s642 + $0x10] sm:$0xff]
  %v646 = vld [vmem:[%s642 + $0x18] sm:$0xff]
  %v647 = vld [vmem:[%s642 + $0x20] sm:$0xff]
  %v648 = vld [vmem:[%s642 + $0x28] sm:$0xff]
  %v649 = vld [vmem:[%s642 + $0x30] sm:$0xff]
  %v650 = vld [vmem:[%s642 + $0x38] sm:$0xff]
  %v651 = vld [vmem:[%s642 + $0x40] sm:$0xff]
  %v652 = vld [vmem:[%s642 + $0x48] sm:$0xff]
  %v653 = vld [vmem:[%s642 + $0x50] sm:$0xff]
  %v654 = vld [vmem:[%s642 + $0x58] sm:$0xff]
  %v655 = vld [vmem:[%s642 + $0x60] sm:$0xff]
  %v656 = vld [vmem:[%s642 + $0x68] sm:$0xff]
  %v657 = vld [vmem:[%s642 + $0x70] sm:$0xff]
  %v658 = vld [vmem:[%s642 + $0x78] sm:$0xff]
  %v659 = vld [vmem:[%s642 + $0x80] sm:$0xff]
  %v660 = vld [vmem:[%s642 + $0x88] sm:$0xff]
  %v661 = vld [vmem:[%s642 + $0x90] sm:$0xff]
  %v662 = vld [vmem:[%s642 + $0x98] sm:$0xff]
  %v663 = vld [vmem:[%s642 + $0xa0] sm:$0xff]
  %v664 = vld [vmem:[%s642 + $0xa8] sm:$0xff]
  %v665 = vld [vmem:[%s642 + $0xb0] sm:$0xff]
  %v666 = vld [vmem:[%s642 + $0xb8] sm:$0xff]
  %v667 = vld [vmem:[%s642 + $0xc0] sm:$0xff]
  %v668 = vld [vmem:[%s642 + $0xc8] sm:$0xff]
  %v669 = vld [vmem:[%s642 + $0xd0] sm:$0xff]
  %v670 = vld [vmem:[%s642 + $0xd8] sm:$0xff]
  %v671 = vld [vmem:[%s642 + $0xe0] sm:$0xff]
  %v672 = vld [vmem:[%s642 + $0xe8] sm:$0xff]
  %v673 = vld [vmem:[%s642 + $0xf0] sm:$0xff]
  %v674 = vld [vmem:[%s642 + $0xf8] sm:$0xff]
  %v675 = vld [vmem:[%s642 + $0x100] sm:$0xff]
  %v676 = vld [vmem:[%s642 + $0x108] sm:$0xff]
  %v677 = vld [vmem:[%s642 + $0x110] sm:$0xff]
  %v678 = vld [vmem:[%s642 + $0x118] sm:$0xff]
  %v679 = vld [vmem:[%s642 + $0x120] sm:$0xff]
  %v680 = vld [vmem:[%s642 + $0x128] sm:$0xff]
  %v681 = vld [vmem:[%s642 + $0x130] sm:$0xff]
  %v682 = vld [vmem:[%s642 + $0x138] sm:$0xff]
  %v683 = vld [vmem:[%s642 + $0x140] sm:$0xff]
  %v684 = vld [vmem:[%s642 + $0x148] sm:$0xff]
  %v685 = vld [vmem:[%s642 + $0x150] sm:$0xff]
  %v686 = vld [vmem:[%s642 + $0x158] sm:$0xff]
  %v687 = vld [vmem:[%s642 + $0x160] sm:$0xff]
  %v688 = vld [vmem:[%s642 + $0x168] sm:$0xff]
  %v689 = vld [vmem:[%s642 + $0x170] sm:$0xff]
  %v690 = vld [vmem:[%s642 + $0x178] sm:$0xff]
  %v691 = vld [vmem:[%s642 + $0x180] sm:$0xff]
  %v692 = vld [vmem:[%s642 + $0x188] sm:$0xff]
  %v693 = vld [vmem:[%s642 + $0x190] sm:$0xff]
  %v694 = vld [vmem:[%s642 + $0x198] sm:$0xff]
  %v695 = vld [vmem:[%s642 + $0x1a0] sm:$0xff]
  %v696 = vld [vmem:[%s642 + $0x1a8] sm:$0xff]
  %v697 = vld [vmem:[%s642 + $0x1b0] sm:$0xff]
  %v698 = vld [vmem:[%s642 + $0x1b8] sm:$0xff]
  %v699 = vld [vmem:[%s642 + $0x1c0] sm:$0xff]
  %v700 = vld [vmem:[%s642 + $0x1c8] sm:$0xff]
  %v701 = vld [vmem:[%s642 + $0x1d0] sm:$0xff]
  %v702 = vld [vmem:[%s642 + $0x1d8] sm:$0xff]
  %v703 = vld [vmem:[%s642 + $0x1e0] sm:$0xff]
  %v704 = vld [vmem:[%s642 + $0x1e8] sm:$0xff]
  %v705 = vld [vmem:[%s642 + $0x1f0] sm:$0xff]
  %v706 = vld [vmem:[%s642 + $0x1f8] sm:$0xff]
  %s707 = scalar_lea.vmem %s2, 4
  %v708 = vld [vmem:[%s707] ss:$8 sm:$0x3]
  %v710 = vlaneseq
  %v711 = vshrl.u32 %v710, 7
  %v712 = vsub.s32 0, %v711
  %v713 = vrot.slane %v708, %v712
  %v714 = vlaneseq
  %v715 = vshrl.u32 %v714, 7
  %v716 = vsub.s32 1, %v715
  %v717 = vrot.slane %v708, %v716
  %720 = vmatprep.subr.mxu0 %v644
  %721 = vmatpush1.msra.mxu0 %v643
  %722 = vmatprep.subr.mxu0 %v646
  %723 = vmatpush1.msra.mxu0 %v645
  %724 = vmatprep.subr.mxu0 %v648
  %725 = vmatpush1.msra.mxu0 %v647
  %726 = vmatprep.subr.mxu0 %v650
  %727 = vmatpush1.msra.mxu0 %v649
  %728 = vmatprep.subr.mxu0 %v652
  %729 = vmatpush1.msra.mxu0 %v651
  %730 = vmatprep.subr.mxu0 %v654
  %731 = vmatpush1.msra.mxu0 %v653
  %732 = vmatprep.subr.mxu0 %v656
  %733 = vmatpush1.msra.mxu0 %v655
  %734 = vmatprep.subr.mxu0 %v658
  %735 = vmatpush1.msra.mxu0 %v657
  %736 = vmatprep.subr.mxu0 %v660
  %737 = vmatpush1.msra.mxu0 %v659
  %738 = vmatprep.subr.mxu0 %v662
  %739 = vmatpush1.msra.mxu0 %v661
  %740 = vmatprep.subr.mxu0 %v664
  %741 = vmatpush1.msra.mxu0 %v663
  %742 = vmatprep.subr.mxu0 %v666
  %743 = vmatpush1.msra.mxu0 %v665
  %744 = vmatprep.subr.mxu0 %v668
  %745 = vmatpush1.msra.mxu0 %v667
  %746 = vmatprep.subr.mxu0 %v670
  %747 = vmatpush1.msra.mxu0 %v669
  %748 = vmatprep.subr.mxu0 %v672
  %749 = vmatpush1.msra.mxu0 %v671
  %750 = vmatprep.subr.mxu0 %v674
  %751 = vmatpush1.msra.mxu0 %v673
  %752 = vmatprep.subr.mxu0 %v676
  %753 = vmatpush1.msra.mxu0 %v675
  %754 = vmatprep.subr.mxu0 %v678
  %755 = vmatpush1.msra.mxu0 %v677
  %756 = vmatprep.subr.mxu0 %v680
  %757 = vmatpush1.msra.mxu0 %v679
  %758 = vmatprep.subr.mxu0 %v682
  %759 = vmatpush1.msra.mxu0 %v681
  %760 = vmatprep.subr.mxu0 %v684
  %761 = vmatpush1.msra.mxu0 %v683
  %762 = vmatprep.subr.mxu0 %v686
  %763 = vmatpush1.msra.mxu0 %v685
  %764 = vmatprep.subr.mxu0 %v688
  %765 = vmatpush1.msra.mxu0 %v687
  %766 = vmatprep.subr.mxu0 %v690
  %767 = vmatpush1.msra.mxu0 %v689
  %768 = vmatprep.subr.mxu0 %v692
  %769 = vmatpush1.msra.mxu0 %v691
  %770 = vmatprep.subr.mxu0 %v694
  %771 = vmatpush1.msra.mxu0 %v693
  %772 = vmatprep.subr.mxu0 %v696
  %773 = vmatpush1.msra.mxu0 %v695
  %774 = vmatprep.subr.mxu0 %v698
  %775 = vmatpush1.msra.mxu0 %v697
  %776 = vmatprep.subr.mxu0 %v700
  %777 = vmatpush1.msra.mxu0 %v699
  %778 = vmatprep.subr.mxu0 %v702
  %779 = vmatpush1.msra.mxu0 %v701
  %780 = vmatprep.subr.mxu0 %v704
  %781 = vmatpush1.msra.mxu0 %v703
  %782 = vmatprep.subr.mxu0 %v706
  %783 = vmatpush1.msra.mxu0 %v705
  %784 = vmatprep.mubr.f32.mxu0 %v641
  %785 = vmatmul.mubr.f32.gmra.mrb[0].mxu0 %v640
  %v786 = vpop.f32.mrb[0].mxu0
  %v787 = vadd.f32 %v713, %v786
  %v788 = vpop.f32.mrb[0].mxu0
  %v789 = vadd.f32 %v717, %v788
  %790 = vdwg.mxu0
  %v791 = vmul.f32 %v787, 0.2
  %v792 = vmul.f32 %v789, 0.2
  %v793 = vmax.f32 %v787, %v791
  %v794 = vmax.f32 %v789, %v792
  %s795 = scalar_lea.vmem %s1, 2560
  %v796 = vld [vmem:[%s795] sm:$0xff]
  %v797 = vld [vmem:[%s795 + $0x8] sm:$0xff]
  %v798 = vld [vmem:[%s795 + $0x10] sm:$0xff]
  %v799 = vld [vmem:[%s795 + $0x18] sm:$0xff]
  %v800 = vld [vmem:[%s795 + $0x20] sm:$0xff]
  %v801 = vld [vmem:[%s795 + $0x28] sm:$0xff]
  %v802 = vld [vmem:[%s795 + $0x30] sm:$0xff]
  %v803 = vld [vmem:[%s795 + $0x38] sm:$0xff]
  %v804 = vld [vmem:[%s795 + $0x40] sm:$0xff]
  %v805 = vld [vmem:[%s795 + $0x48] sm:$0xff]
  %v806 = vld [vmem:[%s795 + $0x50] sm:$0xff]
  %v807 = vld [vmem:[%s795 + $0x58] sm:$0xff]
  %v808 = vld [vmem:[%s795 + $0x60] sm:$0xff]
  %v809 = vld [vmem:[%s795 + $0x68] sm:$0xff]
  %v810 = vld [vmem:[%s795 + $0x70] sm:$0xff]
  %v811 = vld [vmem:[%s795 + $0x78] sm:$0xff]
  %v812 = vld [vmem:[%s795 + $0x80] sm:$0xff]
  %v813 = vld [vmem:[%s795 + $0x88] sm:$0xff]
  %v814 = vld [vmem:[%s795 + $0x90] sm:$0xff]
  %v815 = vld [vmem:[%s795 + $0x98] sm:$0xff]
  %v816 = vld [vmem:[%s795 + $0xa0] sm:$0xff]
  %v817 = vld [vmem:[%s795 + $0xa8] sm:$0xff]
  %v818 = vld [vmem:[%s795 + $0xb0] sm:$0xff]
  %v819 = vld [vmem:[%s795 + $0xb8] sm:$0xff]
  %v820 = vld [vmem:[%s795 + $0xc0] sm:$0xff]
  %v821 = vld [vmem:[%s795 + $0xc8] sm:$0xff]
  %v822 = vld [vmem:[%s795 + $0xd0] sm:$0xff]
  %v823 = vld [vmem:[%s795 + $0xd8] sm:$0xff]
  %v824 = vld [vmem:[%s795 + $0xe0] sm:$0xff]
  %v825 = vld [vmem:[%s795 + $0xe8] sm:$0xff]
  %v826 = vld [vmem:[%s795 + $0xf0] sm:$0xff]
  %v827 = vld [vmem:[%s795 + $0xf8] sm:$0xff]
  %v828 = vld [vmem:[%s795 + $0x100] sm:$0xff]
  %v829 = vld [vmem:[%s795 + $0x108] sm:$0xff]
  %v830 = vld [vmem:[%s795 + $0x110] sm:$0xff]
  %v831 = vld [vmem:[%s795 + $0x118] sm:$0xff]
  %v832 = vld [vmem:[%s795 + $0x120] sm:$0xff]
  %v833 = vld [vmem:[%s795 + $0x128] sm:$0xff]
  %v834 = vld [vmem:[%s795 + $0x130] sm:$0xff]
  %v835 = vld [vmem:[%s795 + $0x138] sm:$0xff]
  %v836 = vld [vmem:[%s795 + $0x140] sm:$0xff]
  %v837 = vld [vmem:[%s795 + $0x148] sm:$0xff]
  %v838 = vld [vmem:[%s795 + $0x150] sm:$0xff]
  %v839 = vld [vmem:[%s795 + $0x158] sm:$0xff]
  %v840 = vld [vmem:[%s795 + $0x160] sm:$0xff]
  %v841 = vld [vmem:[%s795 + $0x168] sm:$0xff]
  %v842 = vld [vmem:[%s795 + $0x170] sm:$0xff]
  %v843 = vld [vmem:[%s795 + $0x178] sm:$0xff]
  %v844 = vld [vmem:[%s795 + $0x180] sm:$0xff]
  %v845 = vld [vmem:[%s795 + $0x188] sm:$0xff]
  %v846 = vld [vmem:[%s795 + $0x190] sm:$0xff]
  %v847 = vld [vmem:[%s795 + $0x198] sm:$0xff]
  %v848 = vld [vmem:[%s795 + $0x1a0] sm:$0xff]
  %v849 = vld [vmem:[%s795 + $0x1a8] sm:$0xff]
  %v850 = vld [vmem:[%s795 + $0x1b0] sm:$0xff]
  %v851 = vld [vmem:[%s795 + $0x1b8] sm:$0xff]
  %v852 = vld [vmem:[%s795 + $0x1c0] sm:$0xff]
  %v853 = vld [vmem:[%s795 + $0x1c8] sm:$0xff]
  %v854 = vld [vmem:[%s795 + $0x1d0] sm:$0xff]
  %v855 = vld [vmem:[%s795 + $0x1d8] sm:$0xff]
  %v856 = vld [vmem:[%s795 + $0x1e0] sm:$0xff]
  %v857 = vld [vmem:[%s795 + $0x1e8] sm:$0xff]
  %v858 = vld [vmem:[%s795 + $0x1f0] sm:$0xff]
  %v859 = vld [vmem:[%s795 + $0x1f8] sm:$0xff]
  %s860 = scalar_lea.vmem %s2, 5
  %v861 = vld [vmem:[%s860] ss:$8 sm:$0x3]
  %v863 = vlaneseq
  %v864 = vshrl.u32 %v863, 7
  %v865 = vsub.s32 0, %v864
  %v866 = vrot.slane %v861, %v865
  %v867 = vlaneseq
  %v868 = vshrl.u32 %v867, 7
  %v869 = vsub.s32 1, %v868
  %v870 = vrot.slane %v861, %v869
  %873 = vmatprep.subr.mxu0 %v797
  %874 = vmatpush1.msra.mxu0 %v796
  %875 = vmatprep.subr.mxu0 %v799
  %876 = vmatpush1.msra.mxu0 %v798
  %877 = vmatprep.subr.mxu0 %v801
  %878 = vmatpush1.msra.mxu0 %v800
  %879 = vmatprep.subr.mxu0 %v803
  %880 = vmatpush1.msra.mxu0 %v802
  %881 = vmatprep.subr.mxu0 %v805
  %882 = vmatpush1.msra.mxu0 %v804
  %883 = vmatprep.subr.mxu0 %v807
  %884 = vmatpush1.msra.mxu0 %v806
  %885 = vmatprep.subr.mxu0 %v809
  %886 = vmatpush1.msra.mxu0 %v808
  %887 = vmatprep.subr.mxu0 %v811
  %888 = vmatpush1.msra.mxu0 %v810
  %889 = vmatprep.subr.mxu0 %v813
  %890 = vmatpush1.msra.mxu0 %v812
  %891 = vmatprep.subr.mxu0 %v815
  %892 = vmatpush1.msra.mxu0 %v814
  %893 = vmatprep.subr.mxu0 %v817
  %894 = vmatpush1.msra.mxu0 %v816
  %895 = vmatprep.subr.mxu0 %v819
  %896 = vmatpush1.msra.mxu0 %v818
  %897 = vmatprep.subr.mxu0 %v821
  %898 = vmatpush1.msra.mxu0 %v820
  %899 = vmatprep.subr.mxu0 %v823
  %900 = vmatpush1.msra.mxu0 %v822
  %901 = vmatprep.subr.mxu0 %v825
  %902 = vmatpush1.msra.mxu0 %v824
  %903 = vmatprep.subr.mxu0 %v827
  %904 = vmatpush1.msra.mxu0 %v826
  %905 = vmatprep.subr.mxu0 %v829
  %906 = vmatpush1.msra.mxu0 %v828
  %907 = vmatprep.subr.mxu0 %v831
  %908 = vmatpush1.msra.mxu0 %v830
  %909 = vmatprep.subr.mxu0 %v833
  %910 = vmatpush1.msra.mxu0 %v832
  %911 = vmatprep.subr.mxu0 %v835
  %912 = vmatpush1.msra.mxu0 %v834
  %913 = vmatprep.subr.mxu0 %v837
  %914 = vmatpush1.msra.mxu0 %v836
  %915 = vmatprep.subr.mxu0 %v839
  %916 = vmatpush1.msra.mxu0 %v838
  %917 = vmatprep.subr.mxu0 %v841
  %918 = vmatpush1.msra.mxu0 %v840
  %919 = vmatprep.subr.mxu0 %v843
  %920 = vmatpush1.msra.mxu0 %v842
  %921 = vmatprep.subr.mxu0 %v845
  %922 = vmatpush1.msra.mxu0 %v844
  %923 = vmatprep.subr.mxu0 %v847
  %924 = vmatpush1.msra.mxu0 %v846
  %925 = vmatprep.subr.mxu0 %v849
  %926 = vmatpush1.msra.mxu0 %v848
  %927 = vmatprep.subr.mxu0 %v851
  %928 = vmatpush1.msra.mxu0 %v850
  %929 = vmatprep.subr.mxu0 %v853
  %930 = vmatpush1.msra.mxu0 %v852
  %931 = vmatprep.subr.mxu0 %v855
  %932 = vmatpush1.msra.mxu0 %v854
  %933 = vmatprep.subr.mxu0 %v857
  %934 = vmatpush1.msra.mxu0 %v856
  %935 = vmatprep.subr.mxu0 %v859
  %936 = vmatpush1.msra.mxu0 %v858
  %937 = vmatprep.mubr.f32.mxu0 %v794
  %938 = vmatmul.mubr.f32.gmra.mrb[0].mxu0 %v793
  %v939 = vpop.f32.mrb[0].mxu0
  %v940 = vadd.f32 %v866, %v939
  %v941 = vpop.f32.mrb[0].mxu0
  %v942 = vadd.f32 %v870, %v941
  %943 = vdwg.mxu0
  %v944 = vmul.f32 %v940, 0.2
  %v945 = vmul.f32 %v942, 0.2
  %v946 = vmax.f32 %v940, %v944
  %v947 = vmax.f32 %v942, %v945
  %s948 = scalar_lea.vmem %s1, 3072
  %v949 = vld [vmem:[%s948] sm:$0xff]
  %v950 = vld [vmem:[%s948 + $0x8] sm:$0xff]
  %v951 = vld [vmem:[%s948 + $0x10] sm:$0xff]
  %v952 = vld [vmem:[%s948 + $0x18] sm:$0xff]
  %v953 = vld [vmem:[%s948 + $0x20] sm:$0xff]
  %v954 = vld [vmem:[%s948 + $0x28] sm:$0xff]
  %v955 = vld [vmem:[%s948 + $0x30] sm:$0xff]
  %v956 = vld [vmem:[%s948 + $0x38] sm:$0xff]
  %v957 = vld [vmem:[%s948 + $0x40] sm:$0xff]
  %v958 = vld [vmem:[%s948 + $0x48] sm:$0xff]
  %v959 = vld [vmem:[%s948 + $0x50] sm:$0xff]
  %v960 = vld [vmem:[%s948 + $0x58] sm:$0xff]
  %v961 = vld [vmem:[%s948 + $0x60] sm:$0xff]
  %v962 = vld [vmem:[%s948 + $0x68] sm:$0xff]
  %v963 = vld [vmem:[%s948 + $0x70] sm:$0xff]
  %v964 = vld [vmem:[%s948 + $0x78] sm:$0xff]
  %v965 = vld [vmem:[%s948 + $0x80] sm:$0xff]
  %v966 = vld [vmem:[%s948 + $0x88] sm:$0xff]
  %v967 = vld [vmem:[%s948 + $0x90] sm:$0xff]
  %v968 = vld [vmem:[%s948 + $0x98] sm:$0xff]
  %v969 = vld [vmem:[%s948 + $0xa0] sm:$0xff]
  %v970 = vld [vmem:[%s948 + $0xa8] sm:$0xff]
  %v971 = vld [vmem:[%s948 + $0xb0] sm:$0xff]
  %v972 = vld [vmem:[%s948 + $0xb8] sm:$0xff]
  %v973 = vld [vmem:[%s948 + $0xc0] sm:$0xff]
  %v974 = vld [vmem:[%s948 + $0xc8] sm:$0xff]
  %v975 = vld [vmem:[%s948 + $0xd0] sm:$0xff]
  %v976 = vld [vmem:[%s948 + $0xd8] sm:$0xff]
  %v977 = vld [vmem:[%s948 + $0xe0] sm:$0xff]
  %v978 = vld [vmem:[%s948 + $0xe8] sm:$0xff]
  %v979 = vld [vmem:[%s948 + $0xf0] sm:$0xff]
  %v980 = vld [vmem:[%s948 + $0xf8] sm:$0xff]
  %v981 = vld [vmem:[%s948 + $0x100] sm:$0xff]
  %v982 = vld [vmem:[%s948 + $0x108] sm:$0xff]
  %v983 = vld [vmem:[%s948 + $0x110] sm:$0xff]
  %v984 = vld [vmem:[%s948 + $0x118] sm:$0xff]
  %v985 = vld [vmem:[%s948 + $0x120] sm:$0xff]
  %v986 = vld [vmem:[%s948 + $0x128] sm:$0xff]
  %v987 = vld [vmem:[%s948 + $0x130] sm:$0xff]
  %v988 = vld [vmem:[%s948 + $0x138] sm:$0xff]
  %v989 = vld [vmem:[%s948 + $0x140] sm:$0xff]
  %v990 = vld [vmem:[%s948 + $0x148] sm:$0xff]
  %v991 = vld [vmem:[%s948 + $0x150] sm:$0xff]
  %v992 = vld [vmem:[%s948 + $0x158] sm:$0xff]
  %v993 = vld [vmem:[%s948 + $0x160] sm:$0xff]
  %v994 = vld [vmem:[%s948 + $0x168] sm:$0xff]
  %v995 = vld [vmem:[%s948 + $0x170] sm:$0xff]
  %v996 = vld [vmem:[%s948 + $0x178] sm:$0xff]
  %v997 = vld [vmem:[%s948 + $0x180] sm:$0xff]
  %v998 = vld [vmem:[%s948 + $0x188] sm:$0xff]
  %v999 = vld [vmem:[%s948 + $0x190] sm:$0xff]
  %v1000 = vld [vmem:[%s948 + $0x198] sm:$0xff]
  %v1001 = vld [vmem:[%s948 + $0x1a0] sm:$0xff]
  %v1002 = vld [vmem:[%s948 + $0x1a8] sm:$0xff]
  %v1003 = vld [vmem:[%s948 + $0x1b0] sm:$0xff]
  %v1004 = vld [vmem:[%s948 + $0x1b8] sm:$0xff]
  %v1005 = vld [vmem:[%s948 + $0x1c0] sm:$0xff]
  %v1006 = vld [vmem:[%s948 + $0x1c8] sm:$0xff]
  %v1007 = vld [vmem:[%s948 + $0x1d0] sm:$0xff]
  %v1008 = vld [vmem:[%s948 + $0x1d8] sm:$0xff]
  %v1009 = vld [vmem:[%s948 + $0x1e0] sm:$0xff]
  %v1010 = vld [vmem:[%s948 + $0x1e8] sm:$0xff]
  %v1011 = vld [vmem:[%s948 + $0x1f0] sm:$0xff]
  %v1012 = vld [vmem:[%s948 + $0x1f8] sm:$0xff]
  %s1013 = scalar_lea.vmem %s2, 6
  %v1014 = vld [vmem:[%s1013] ss:$8 sm:$0x3]
  %v1016 = vlaneseq
  %v1017 = vshrl.u32 %v1016, 7
  %v1018 = vsub.s32 0, %v1017
  %v1019 = vrot.slane %v1014, %v1018
  %v1020 = vlaneseq
  %v1021 = vshrl.u32 %v1020, 7
  %v1022 = vsub.s32 1, %v1021
  %v1023 = vrot.slane %v1014, %v1022
  %1026 = vmatprep.subr.mxu0 %v950
  %1027 = vmatpush1.msra.mxu0 %v949
  %1028 = vmatprep.subr.mxu0 %v952
  %1029 = vmatpush1.msra.mxu0 %v951
  %1030 = vmatprep.subr.mxu0 %v954
  %1031 = vmatpush1.msra.mxu0 %v953
  %1032 = vmatprep.subr.mxu0 %v956
  %1033 = vmatpush1.msra.mxu0 %v955
  %1034 = vmatprep.subr.mxu0 %v958
  %1035 = vmatpush1.msra.mxu0 %v957
  %1036 = vmatprep.subr.mxu0 %v960
  %1037 = vmatpush1.msra.mxu0 %v959
  %1038 = vmatprep.subr.mxu0 %v962
  %1039 = vmatpush1.msra.mxu0 %v961
  %1040 = vmatprep.subr.mxu0 %v964
  %1041 = vmatpush1.msra.mxu0 %v963
  %1042 = vmatprep.subr.mxu0 %v966
  %1043 = vmatpush1.msra.mxu0 %v965
  %1044 = vmatprep.subr.mxu0 %v968
  %1045 = vmatpush1.msra.mxu0 %v967
  %1046 = vmatprep.subr.mxu0 %v970
  %1047 = vmatpush1.msra.mxu0 %v969
  %1048 = vmatprep.subr.mxu0 %v972
  %1049 = vmatpush1.msra.mxu0 %v971
  %1050 = vmatprep.subr.mxu0 %v974
  %1051 = vmatpush1.msra.mxu0 %v973
  %1052 = vmatprep.subr.mxu0 %v976
  %1053 = vmatpush1.msra.mxu0 %v975
  %1054 = vmatprep.subr.mxu0 %v978
  %1055 = vmatpush1.msra.mxu0 %v977
  %1056 = vmatprep.subr.mxu0 %v980
  %1057 = vmatpush1.msra.mxu0 %v979
  %1058 = vmatprep.subr.mxu0 %v982
  %1059 = vmatpush1.msra.mxu0 %v981
  %1060 = vmatprep.subr.mxu0 %v984
  %1061 = vmatpush1.msra.mxu0 %v983
  %1062 = vmatprep.subr.mxu0 %v986
  %1063 = vmatpush1.msra.mxu0 %v985
  %1064 = vmatprep.subr.mxu0 %v988
  %1065 = vmatpush1.msra.mxu0 %v987
  %1066 = vmatprep.subr.mxu0 %v990
  %1067 = vmatpush1.msra.mxu0 %v989
  %1068 = vmatprep.subr.mxu0 %v992
  %1069 = vmatpush1.msra.mxu0 %v991
  %1070 = vmatprep.subr.mxu0 %v994
  %1071 = vmatpush1.msra.mxu0 %v993
  %1072 = vmatprep.subr.mxu0 %v996
  %1073 = vmatpush1.msra.mxu0 %v995
  %1074 = vmatprep.subr.mxu0 %v998
  %1075 = vmatpush1.msra.mxu0 %v997
  %1076 = vmatprep.subr.mxu0 %v1000
  %1077 = vmatpush1.msra.mxu0 %v999
  %1078 = vmatprep.subr.mxu0 %v1002
  %1079 = vmatpush1.msra.mxu0 %v1001
  %1080 = vmatprep.subr.mxu0 %v1004
  %1081 = vmatpush1.msra.mxu0 %v1003
  %1082 = vmatprep.subr.mxu0 %v1006
  %1083 = vmatpush1.msra.mxu0 %v1005
  %1084 = vmatprep.subr.mxu0 %v1008
  %1085 = vmatpush1.msra.mxu0 %v1007
  %1086 = vmatprep.subr.mxu0 %v1010
  %1087 = vmatpush1.msra.mxu0 %v1009
  %1088 = vmatprep.subr.mxu0 %v1012
  %1089 = vmatpush1.msra.mxu0 %v1011
  %1090 = vmatprep.mubr.f32.mxu0 %v947
  %1091 = vmatmul.mubr.f32.gmra.mrb[0].mxu0 %v946
  %v1092 = vpop.f32.mrb[0].mxu0
  %v1093 = vadd.f32 %v1019, %v1092
  %v1094 = vpop.f32.mrb[0].mxu0
  %v1095 = vadd.f32 %v1023, %v1094
  %1096 = vdwg.mxu0
  %v1097 = vmul.f32 %v1093, 0.2
  %v1098 = vmul.f32 %v1095, 0.2
  %v1099 = vmax.f32 %v1093, %v1097
  %v1100 = vmax.f32 %v1095, %v1098
  %s1101 = scalar_lea.vmem %s1, 3584
  %v1102 = vld [vmem:[%s1101] sm:$0xff]
  %v1103 = vld [vmem:[%s1101 + $0x8] sm:$0xff]
  %v1104 = vld [vmem:[%s1101 + $0x10] sm:$0xff]
  %v1105 = vld [vmem:[%s1101 + $0x18] sm:$0xff]
  %v1106 = vld [vmem:[%s1101 + $0x20] sm:$0xff]
  %v1107 = vld [vmem:[%s1101 + $0x28] sm:$0xff]
  %v1108 = vld [vmem:[%s1101 + $0x30] sm:$0xff]
  %v1109 = vld [vmem:[%s1101 + $0x38] sm:$0xff]
  %v1110 = vld [vmem:[%s1101 + $0x40] sm:$0xff]
  %v1111 = vld [vmem:[%s1101 + $0x48] sm:$0xff]
  %v1112 = vld [vmem:[%s1101 + $0x50] sm:$0xff]
  %v1113 = vld [vmem:[%s1101 + $0x58] sm:$0xff]
  %v1114 = vld [vmem:[%s1101 + $0x60] sm:$0xff]
  %v1115 = vld [vmem:[%s1101 + $0x68] sm:$0xff]
  %v1116 = vld [vmem:[%s1101 + $0x70] sm:$0xff]
  %v1117 = vld [vmem:[%s1101 + $0x78] sm:$0xff]
  %v1118 = vld [vmem:[%s1101 + $0x80] sm:$0xff]
  %v1119 = vld [vmem:[%s1101 + $0x88] sm:$0xff]
  %v1120 = vld [vmem:[%s1101 + $0x90] sm:$0xff]
  %v1121 = vld [vmem:[%s1101 + $0x98] sm:$0xff]
  %v1122 = vld [vmem:[%s1101 + $0xa0] sm:$0xff]
  %v1123 = vld [vmem:[%s1101 + $0xa8] sm:$0xff]
  %v1124 = vld [vmem:[%s1101 + $0xb0] sm:$0xff]
  %v1125 = vld [vmem:[%s1101 + $0xb8] sm:$0xff]
  %v1126 = vld [vmem:[%s1101 + $0xc0] sm:$0xff]
  %v1127 = vld [vmem:[%s1101 + $0xc8] sm:$0xff]
  %v1128 = vld [vmem:[%s1101 + $0xd0] sm:$0xff]
  %v1129 = vld [vmem:[%s1101 + $0xd8] sm:$0xff]
  %v1130 = vld [vmem:[%s1101 + $0xe0] sm:$0xff]
  %v1131 = vld [vmem:[%s1101 + $0xe8] sm:$0xff]
  %v1132 = vld [vmem:[%s1101 + $0xf0] sm:$0xff]
  %v1133 = vld [vmem:[%s1101 + $0xf8] sm:$0xff]
  %v1134 = vld [vmem:[%s1101 + $0x100] sm:$0xff]
  %v1135 = vld [vmem:[%s1101 + $0x108] sm:$0xff]
  %v1136 = vld [vmem:[%s1101 + $0x110] sm:$0xff]
  %v1137 = vld [vmem:[%s1101 + $0x118] sm:$0xff]
  %v1138 = vld [vmem:[%s1101 + $0x120] sm:$0xff]
  %v1139 = vld [vmem:[%s1101 + $0x128] sm:$0xff]
  %v1140 = vld [vmem:[%s1101 + $0x130] sm:$0xff]
  %v1141 = vld [vmem:[%s1101 + $0x138] sm:$0xff]
  %v1142 = vld [vmem:[%s1101 + $0x140] sm:$0xff]
  %v1143 = vld [vmem:[%s1101 + $0x148] sm:$0xff]
  %v1144 = vld [vmem:[%s1101 + $0x150] sm:$0xff]
  %v1145 = vld [vmem:[%s1101 + $0x158] sm:$0xff]
  %v1146 = vld [vmem:[%s1101 + $0x160] sm:$0xff]
  %v1147 = vld [vmem:[%s1101 + $0x168] sm:$0xff]
  %v1148 = vld [vmem:[%s1101 + $0x170] sm:$0xff]
  %v1149 = vld [vmem:[%s1101 + $0x178] sm:$0xff]
  %v1150 = vld [vmem:[%s1101 + $0x180] sm:$0xff]
  %v1151 = vld [vmem:[%s1101 + $0x188] sm:$0xff]
  %v1152 = vld [vmem:[%s1101 + $0x190] sm:$0xff]
  %v1153 = vld [vmem:[%s1101 + $0x198] sm:$0xff]
  %v1154 = vld [vmem:[%s1101 + $0x1a0] sm:$0xff]
  %v1155 = vld [vmem:[%s1101 + $0x1a8] sm:$0xff]
  %v1156 = vld [vmem:[%s1101 + $0x1b0] sm:$0xff]
  %v1157 = vld [vmem:[%s1101 + $0x1b8] sm:$0xff]
  %v1158 = vld [vmem:[%s1101 + $0x1c0] sm:$0xff]
  %v1159 = vld [vmem:[%s1101 + $0x1c8] sm:$0xff]
  %v1160 = vld [vmem:[%s1101 + $0x1d0] sm:$0xff]
  %v1161 = vld [vmem:[%s1101 + $0x1d8] sm:$0xff]
  %v1162 = vld [vmem:[%s1101 + $0x1e0] sm:$0xff]
  %v1163 = vld [vmem:[%s1101 + $0x1e8] sm:$0xff]
  %v1164 = vld [vmem:[%s1101 + $0x1f0] sm:$0xff]
  %v1165 = vld [vmem:[%s1101 + $0x1f8] sm:$0xff]
  %s1166 = scalar_lea.vmem %s2, 7
  %v1167 = vld [vmem:[%s1166] ss:$8 sm:$0x3]
  %v1169 = vlaneseq
  %v1170 = vshrl.u32 %v1169, 7
  %v1171 = vsub.s32 0, %v1170
  %v1172 = vrot.slane %v1167, %v1171
  %v1173 = vlaneseq
  %v1174 = vshrl.u32 %v1173, 7
  %v1175 = vsub.s32 1, %v1174
  %v1176 = vrot.slane %v1167, %v1175
  %1179 = vmatprep.subr.mxu0 %v1103
  %1180 = vmatpush1.msra.mxu0 %v1102
  %1181 = vmatprep.subr.mxu0 %v1105
  %1182 = vmatpush1.msra.mxu0 %v1104
  %1183 = vmatprep.subr.mxu0 %v1107
  %1184 = vmatpush1.msra.mxu0 %v1106
  %1185 = vmatprep.subr.mxu0 %v1109
  %1186 = vmatpush1.msra.mxu0 %v1108
  %1187 = vmatprep.subr.mxu0 %v1111
  %1188 = vmatpush1.msra.mxu0 %v1110
  %1189 = vmatprep.subr.mxu0 %v1113
  %1190 = vmatpush1.msra.mxu0 %v1112
  %1191 = vmatprep.subr.mxu0 %v1115
  %1192 = vmatpush1.msra.mxu0 %v1114
  %1193 = vmatprep.subr.mxu0 %v1117
  %1194 = vmatpush1.msra.mxu0 %v1116
  %1195 = vmatprep.subr.mxu0 %v1119
  %1196 = vmatpush1.msra.mxu0 %v1118
  %1197 = vmatprep.subr.mxu0 %v1121
  %1198 = vmatpush1.msra.mxu0 %v1120
  %1199 = vmatprep.subr.mxu0 %v1123
  %1200 = vmatpush1.msra.mxu0 %v1122
  %1201 = vmatprep.subr.mxu0 %v1125
  %1202 = vmatpush1.msra.mxu0 %v1124
  %1203 = vmatprep.subr.mxu0 %v1127
  %1204 = vmatpush1.msra.mxu0 %v1126
  %1205 = vmatprep.subr.mxu0 %v1129
  %1206 = vmatpush1.msra.mxu0 %v1128
  %1207 = vmatprep.subr.mxu0 %v1131
  %1208 = vmatpush1.msra.mxu0 %v1130
  %1209 = vmatprep.subr.mxu0 %v1133
  %1210 = vmatpush1.msra.mxu0 %v1132
  %1211 = vmatprep.subr.mxu0 %v1135
  %1212 = vmatpush1.msra.mxu0 %v1134
  %1213 = vmatprep.subr.mxu0 %v1137
  %1214 = vmatpush1.msra.mxu0 %v1136
  %1215 = vmatprep.subr.mxu0 %v1139
  %1216 = vmatpush1.msra.mxu0 %v1138
  %1217 = vmatprep.subr.mxu0 %v1141
  %1218 = vmatpush1.msra.mxu0 %v1140
  %1219 = vmatprep.subr.mxu0 %v1143
  %1220 = vmatpush1.msra.mxu0 %v1142
  %1221 = vmatprep.subr.mxu0 %v1145
  %1222 = vmatpush1.msra.mxu0 %v1144
  %1223 = vmatprep.subr.mxu0 %v1147
  %1224 = vmatpush1.msra.mxu0 %v1146
  %1225 = vmatprep.subr.mxu0 %v1149
  %1226 = vmatpush1.msra.mxu0 %v1148
  %1227 = vmatprep.subr.mxu0 %v1151
  %1228 = vmatpush1.msra.mxu0 %v1150
  %1229 = vmatprep.subr.mxu0 %v1153
  %1230 = vmatpush1.msra.mxu0 %v1152
  %1231 = vmatprep.subr.mxu0 %v1155
  %1232 = vmatpush1.msra.mxu0 %v1154
  %1233 = vmatprep.subr.mxu0 %v1157
  %1234 = vmatpush1.msra.mxu0 %v1156
  %1235 = vmatprep.subr.mxu0 %v1159
  %1236 = vmatpush1.msra.mxu0 %v1158
  %1237 = vmatprep.subr.mxu0 %v1161
  %1238 = vmatpush1.msra.mxu0 %v1160
  %1239 = vmatprep.subr.mxu0 %v1163
  %1240 = vmatpush1.msra.mxu0 %v1162
  %1241 = vmatprep.subr.mxu0 %v1165
  %1242 = vmatpush1.msra.mxu0 %v1164
  %1243 = vmatprep.mubr.f32.mxu0 %v1100
  %1244 = vmatmul.mubr.f32.gmra.mrb[0].mxu0 %v1099
  %v1245 = vpop.f32.mrb[0].mxu0
  %v1246 = vadd.f32 %v1172, %v1245
  %v1247 = vpop.f32.mrb[0].mxu0
  %v1248 = vadd.f32 %v1176, %v1247
  %1249 = vdwg.mxu0
  %v1250 = vmul.f32 %v1246, 0.2
  %v1251 = vmul.f32 %v1248, 0.2
  %v1252 = vmax.f32 %v1246, %v1250
  %v1253 = vmax.f32 %v1248, %v1251
  %v1254 = vld [vmem:[%s3] sm:$0xff]
  %v1255 = vld [vmem:[%s3 + $0x8] sm:$0xff]
  %v1256 = vld [vmem:[%s3 + $0x10] sm:$0xff]
  %v1257 = vld [vmem:[%s3 + $0x18] sm:$0xff]
  %v1258 = vld [vmem:[%s3 + $0x20] sm:$0xff]
  %v1259 = vld [vmem:[%s3 + $0x28] sm:$0xff]
  %v1260 = vld [vmem:[%s3 + $0x30] sm:$0xff]
  %v1261 = vld [vmem:[%s3 + $0x38] sm:$0xff]
  %v1262 = vld [vmem:[%s3 + $0x40] sm:$0xff]
  %v1263 = vld [vmem:[%s3 + $0x48] sm:$0xff]
  %v1264 = vld [vmem:[%s3 + $0x50] sm:$0xff]
  %v1265 = vld [vmem:[%s3 + $0x58] sm:$0xff]
  %v1266 = vld [vmem:[%s3 + $0x60] sm:$0xff]
  %v1267 = vld [vmem:[%s3 + $0x68] sm:$0xff]
  %v1268 = vld [vmem:[%s3 + $0x70] sm:$0xff]
  %v1269 = vld [vmem:[%s3 + $0x78] sm:$0xff]
  %v1270 = vld [vmem:[%s3 + $0x80] sm:$0xff]
  %v1271 = vld [vmem:[%s3 + $0x88] sm:$0xff]
  %v1272 = vld [vmem:[%s3 + $0x90] sm:$0xff]
  %v1273 = vld [vmem:[%s3 + $0x98] sm:$0xff]
  %v1274 = vld [vmem:[%s3 + $0xa0] sm:$0xff]
  %v1275 = vld [vmem:[%s3 + $0xa8] sm:$0xff]
  %v1276 = vld [vmem:[%s3 + $0xb0] sm:$0xff]
  %v1277 = vld [vmem:[%s3 + $0xb8] sm:$0xff]
  %v1278 = vld [vmem:[%s3 + $0xc0] sm:$0xff]
  %v1279 = vld [vmem:[%s3 + $0xc8] sm:$0xff]
  %v1280 = vld [vmem:[%s3 + $0xd0] sm:$0xff]
  %v1281 = vld [vmem:[%s3 + $0xd8] sm:$0xff]
  %v1282 = vld [vmem:[%s3 + $0xe0] sm:$0xff]
  %v1283 = vld [vmem:[%s3 + $0xe8] sm:$0xff]
  %v1284 = vld [vmem:[%s3 + $0xf0] sm:$0xff]
  %v1285 = vld [vmem:[%s3 + $0xf8] sm:$0xff]
  %1286 = vmatprep.subr.mxu0 0.0
  %1287 = vmatpush1.msra.mxu0 %v1254
  %1288 = vmatprep.subr.mxu0 0.0
  %1289 = vmatpush1.msra.mxu0 %v1255
  %1290 = vmatprep.subr.mxu0 0.0
  %1291 = vmatpush1.msra.mxu0 %v1256
  %1292 = vmatprep.subr.mxu0 0.0
  %1293 = vmatpush1.msra.mxu0 %v1257
  %1294 = vmatprep.subr.mxu0 0.0
  %1295 = vmatpush1.msra.mxu0 %v1258
  %1296 = vmatprep.subr.mxu0 0.0
  %1297 = vmatpush1.msra.mxu0 %v1259
  %1298 = vmatprep.subr.mxu0 0.0
  %1299 = vmatpush1.msra.mxu0 %v1260
  %1300 = vmatprep.subr.mxu0 0.0
  %1301 = vmatpush1.msra.mxu0 %v1261
  %1302 = vmatprep.subr.mxu0 0.0
  %1303 = vmatpush1.msra.mxu0 %v1262
  %1304 = vmatprep.subr.mxu0 0.0
  %1305 = vmatpush1.msra.mxu0 %v1263
  %1306 = vmatprep.subr.mxu0 0.0
  %1307 = vmatpush1.msra.mxu0 %v1264
  %1308 = vmatprep.subr.mxu0 0.0
  %1309 = vmatpush1.msra.mxu0 %v1265
  %1310 = vmatprep.subr.mxu0 0.0
  %1311 = vmatpush1.msra.mxu0 %v1266
  %1312 = vmatprep.subr.mxu0 0.0
  %1313 = vmatpush1.msra.mxu0 %v1267
  %1314 = vmatprep.subr.mxu0 0.0
  %1315 = vmatpush1.msra.mxu0 %v1268
  %1316 = vmatprep.subr.mxu0 0.0
  %1317 = vmatpush1.msra.mxu0 %v1269
  %1318 = vmatprep.subr.mxu0 0.0
  %1319 = vmatpush1.msra.mxu0 %v1270
  %1320 = vmatprep.subr.mxu0 0.0
  %1321 = vmatpush1.msra.mxu0 %v1271
  %1322 = vmatprep.subr.mxu0 0.0
  %1323 = vmatpush1.msra.mxu0 %v1272
  %1324 = vmatprep.subr.mxu0 0.0
  %1325 = vmatpush1.msra.mxu0 %v1273
  %1326 = vmatprep.subr.mxu0 0.0
  %1327 = vmatpush1.msra.mxu0 %v1274
  %1328 = vmatprep.subr.mxu0 0.0
  %1329 = vmatpush1.msra.mxu0 %v1275
  %1330 = vmatprep.subr.mxu0 0.0
  %1331 = vmatpush1.msra.mxu0 %v1276
  %1332 = vmatprep.subr.mxu0 0.0
  %1333 = vmatpush1.msra.mxu0 %v1277
  %1334 = vmatprep.subr.mxu0 0.0
  %1335 = vmatpush1.msra.mxu0 %v1278
  %1336 = vmatprep.subr.mxu0 0.0
  %1337 = vmatpush1.msra.mxu0 %v1279
  %1338 = vmatprep.subr.mxu0 0.0
  %1339 = vmatpush1.msra.mxu0 %v1280
  %1340 = vmatprep.subr.mxu0 0.0
  %1341 = vmatpush1.msra.mxu0 %v1281
  %1342 = vmatprep.subr.mxu0 0.0
  %1343 = vmatpush1.msra.mxu0 %v1282
  %1344 = vmatprep.subr.mxu0 0.0
  %1345 = vmatpush1.msra.mxu0 %v1283
  %1346 = vmatprep.subr.mxu0 0.0
  %1347 = vmatpush1.msra.mxu0 %v1284
  %1348 = vmatprep.subr.mxu0 0.0
  %1349 = vmatpush1.msra.mxu0 %v1285
  %1350 = vmatprep.mubr.f32.mxu0 %v1253
  %1351 = vmatmul.mubr.f32.gmra.mrb[0].mxu0 %v1252
  %v1352 = vpop.f32.mrb[0].mxu0
  %v1353 = vadd.f32 1.0, %v1352
  %v1354 = vpop.f32.mrb[0].mxu0
  %1355 = vdwg.mxu0
  %v1356 = vld [vmem:[%s4] sm:$0xff]
  %v1357 = vld [vmem:[%s4 + $0x8] sm:$0xff]
  %v1358 = vld [vmem:[%s4 + $0x10] sm:$0xff]
  %v1359 = vld [vmem:[%s4 + $0x18] sm:$0xff]
  %v1360 = vlaneseq
  %v1361 = vshrl.u32 %v1360, 7
  %v1362 = vsub.s32 0, %v1361
  %v1363 = vrot.slane %v1353, %v1362
  %v1364 = vmul.f32 %v1356, %v1363
  %v1365 = vmul.f32 %v1357, %v1363
  %v1366 = vmul.f32 %v1358, %v1363
  %v1367 = vmul.f32 %v1359, %v1363
  %v1368 = vmul.f32 %v1364, %v1364
  %v1369 = vmul.f32 %v1365, %v1365
  %v1370 = vmul.f32 %v1366, %v1366
  %v1371 = vmul.f32 %v1367, %v1367
  %vm1372 = vcmask 15360
  %v1373 = vsel %vm1372, %v1368, 0.0
  %1374 = vadd.xlane.f32.xlu0 %v1373
  %v1375 = vpop.xlane.xlu0 %1374
  %v1376 = vsel %vm1372, %v1369, 0.0
  %1377 = vadd.xlane.f32.xlu0 %v1376
  %v1378 = vpop.xlane.xlu0 %1377
  %v1379 = vsel %vm1372, %v1370, 0.0
  %1380 = vadd.xlane.f32.xlu0 %v1379
  %v1381 = vpop.xlane.xlu0 %1380
  %v1382 = vsel %vm1372, %v1371, 0.0
  %1383 = vadd.xlane.f32.xlu0 %v1382
  %v1384 = vpop.xlane.xlu0 %1383
  %v1385 = vadd.f32 %v1375, 1e-08
  %v1386 = vadd.f32 %v1378, 1e-08
  %v1387 = vadd.f32 %v1381, 1e-08
  %v1388 = vadd.f32 %v1384, 1e-08
  %v1389 = vrsqrt.pop %v1385
  %v1390 = vrsqrt.pop %v1386
  %v1391 = vrsqrt.pop %v1387
  %v1392 = vrsqrt.pop %v1388
  %v1393 = vmul.f32 %v1364, %v1389
  %v1394 = vmul.f32 %v1365, %v1390
  %v1395 = vmul.f32 %v1366, %v1391
  %v1396 = vmul.f32 %v1367, %v1392
  %1397 = vst.msk [vmem:[%s5] sm:$0xff] %vm1372, %v1393
  %1398 = vst.msk [vmem:[%s5 + $0x8] sm:$0xff] %vm1372, %v1394
  %1399 = vst.msk [vmem:[%s5 + $0x10] sm:$0xff] %vm1372, %v1395
  %1400 = vst.msk [vmem:[%s5 + $0x18] sm:$0xff] %vm1372, %v1396
  // Predicated region
  $region22: #{align_model_forward.2} parent=0 // pred_check
    _
  $region23: #{align_model_forward.2} parent=0 // pred_check_branch
    %1402 = sbr.rel (0) target = $region25
  $region24: #{align_model_forward.2} parent=0 // pred_region
    _
  $region25: #{align_model_forward.2} parent=0 // pred_fallthru
    _
  // Predicated region
  $region26: #{align_model_forward.2} parent=0 // pred_check
    _
  $region27: #{align_model_forward.2} parent=0 // pred_check_branch
    %1404 = sbr.rel (0) target = $region29
  $region28: #{align_model_forward.2} parent=0 // pred_region
    _
  $region29: #{align_model_forward.2} parent=0 // pred_fallthru
    _

</llo_original>
